<compile_context>
chip_gen: v6e
topology: v6e:2x2x1
jax: 0.10.0
libtpu: 0.0.40
codegen_flags: <defaults>
</compile_context>

<pallas_src>
import functools
import math

import jax
import jax.numpy as jnp
from jax.experimental import pallas as pl
from jax.experimental.pallas import tpu as pltpu

ACTION_BOUNDS = {'egfe': (-0.5, 0.5), 'trptx': (-0.1, 0.1), 'trcit': (-0.1, 0.1)}

STATE_DIM = 8
HIDDEN_DIM = 128
ACTION_DIM = 3          # must match len(ACTION_BOUNDS)

IN_PAD = 128            # packed lane-dense input row : [eps | state | zeros]
OUT_PAD = 128           # packed lane-dense output row: [actions | logp | value | zeros]

_LN_EPS = 1e-5                          # torch.nn.LayerNorm default eps
_LOG_SQRT_2PI = 0.5 * math.log(2.0 * math.pi)


def _round_up(x, m):
    return ((x + m - 1) // m) * m


# -----------------------------------------------------------------------------
# Shared math (used by the Pallas kernel body AND the packed-weights reference).
# -----------------------------------------------------------------------------
def _ln_relu_half(h, g, b):
    """LayerNorm (one-pass variance) + ReLU over one 128-wide half."""
    m = jnp.mean(h, axis=-1, keepdims=True)
    m2 = jnp.mean(h * h, axis=-1, keepdims=True)
    var = jnp.maximum(m2 - m * m, 0.0)
    r = jax.lax.rsqrt(var + _LN_EPS)
    return jnp.maximum((h - m) * r * g + b, 0.0)


def _forward_math(xin, w1, w2, w3, w4, bgb, *, hidden, action_dim, fused):
    """Fused actor+critic forward on a packed, lane-dense batch tile.

    xin : (TB, IN_PAD) f32   lanes [0:A]=eps, [A:A+state_dim]=state, rest 0
    w1  : (IN_PAD, 2H) bf16  (rows for the eps lanes are zero)
    w2,w3: (2H, 2H)   bf16   block-diagonal [actor | critic]
    w4  : (2H, 2*OUT_PAD) bf16  block M: means@0..A-1, value@A+1;
                                 block S: log_stds@0..A-1
    bgb : (16, 2H) f32  rows 0..8 = (b, gamma, beta) x 3 layers, 9 = b4,
                        10 = (low+high)/2, 11 = (high-low)/2
    fused: use 256-wide matmuls (v6e/v7x) vs two 128-wide halves (<=v5).
    Returns the packed (TB, OUT_PAD) output row:
        lanes [0:A] = actions, lane A = log_prob, lane A+1 = value.
    """
    A = action_dim
    H = hidden
    f32 = jnp.float32

    def dot(a, w):
        return jnp.dot(a.astype(w.dtype), w, preferred_element_type=f32)

    def layer(ha, hc, W, row):
        b = bgb[row:row + 1, :]
        g = bgb[row + 1:row + 2, :]
        be = bgb[row + 2:row + 3, :]
        if fused:
            h = dot(jnp.concatenate([ha, hc], axis=-1), W) + b
            ya, yc = h[:, :H], h[:, H:]
        else:
            ya = dot(ha, W[:H, :H]) + b[:, :H]
            yc = dot(hc, W[H:, H:]) + b[:, H:]
        return (_ln_relu_half(ya, g[:, :H], be[:, :H]),
                _ln_relu_half(yc, g[:, H:], be[:, H:]))

    # Layer 1 (shared packed input; eps lanes have zero weight rows).
    b1, g1, be1 = bgb[0:1, :], bgb[1:2, :], bgb[2:3, :]
    if fused:
        h1 = dot(xin, w1) + b1
        ha = _ln_relu_half(h1[:, :H], g1[:, :H], be1[:, :H])
        hc = _ln_relu_half(h1[:, H:], g1[:, H:], be1[:, H:])
    else:
        ha = _ln_relu_half(dot(xin, w1[:, :H]) + b1[:, :H], g1[:, :H], be1[:, :H])
        hc = _ln_relu_half(dot(xin, w1[:, H:]) + b1[:, H:], g1[:, H:], be1[:, H:])

    ha, hc = layer(ha, hc, w2, 3)
    ha, hc = layer(ha, hc, w3, 6)

    # Layer 4 -> two lane-aligned 128-wide blocks (no lane shuffles afterwards).
    b4 = bgb[9:10, :]
    if fused:
        raw = dot(jnp.concatenate([ha, hc], axis=-1), w4) + b4
        raw_m, raw_s = raw[:, :OUT_PAD], raw[:, OUT_PAD:]
    else:
        raw_m = (dot(ha, w4[:H, :OUT_PAD]) + dot(hc, w4[H:, :OUT_PAD])
                 + b4[:, :OUT_PAD])
        raw_s = dot(ha, w4[:H, OUT_PAD:]) + b4[:, OUT_PAD:]

    # Sampling tail: eps, means, log_stds are co-located in lanes 0..A-1.
    log_stds = jnp.clip(raw_s, -5.0, 2.0)
    stds = jnp.exp(log_stds)
    eps = xin[:, :OUT_PAD]                      # lanes 0..A-1 hold N(0,1) noise
    raw_action = raw_m + stds * eps             # lanes 0..A-1 = mean + std*eps
    t = jnp.tanh(raw_action)

    lane = jax.lax.broadcasted_iota(jnp.int32, t.shape, 1)
    act_mask = lane < A

    # Normal(mean, std).log_prob(raw_action) == -0.5*eps^2 - log_std - log(sqrt(2pi))
    # exactly, because raw_action - mean == std * eps.  Plus the tanh correction.
    lp = -0.5 * eps * eps - log_stds - _LOG_SQRT_2PI - jnp.log(1.0 - t * t + 1e-6)
    log_prob = jnp.sum(jnp.where(act_mask, lp, 0.0), axis=-1, keepdims=True)

    mid = bgb[10:11, :OUT_PAD]                  # (low + high) / 2 at lanes 0..A-1
    half = bgb[11:12, :OUT_PAD]                 # (high - low) / 2 at lanes 0..A-1
    actions = mid + half * t

    # Build the full (TB, OUT_PAD) output row in registers -> one unmasked store.
    out_row = jnp.where(act_mask, actions, jnp.where(lane == A + 1, raw_m, 0.0))
    out_row = jnp.where(lane == A, log_prob, out_row)
    return out_row


# -----------------------------------------------------------------------------
# Pallas kernel
# -----------------------------------------------------------------------------
def ppo_fused_kernel(xin_ref, w1_ref, w23_ref, w4_ref, bgb_ref, out_ref, *,
                     hidden, action_dim, fused):
    out_ref[...] = _forward_math(
        xin_ref[...], w1_ref[...], w23_ref[0], w23_ref[1], w4_ref[...],
        bgb_ref[...], hidden=hidden, action_dim=action_dim, fused=fused)


# -----------------------------------------------------------------------------
# Parameter construction / packing
# -----------------------------------------------------------------------------
def _linear_init(key, fan_in, fan_out):
    # PyTorch nn.Linear default: U(-1/sqrt(fan_in), 1/sqrt(fan_in)) for W and b.
    kw, kb = jax.random.split(key)
    bound = 1.0 / math.sqrt(fan_in)
    W = jax.random.uniform(kw, (fan_in, fan_out), jnp.float32, -bound, bound)
    b = jax.random.uniform(kb, (1, fan_out), jnp.float32, -bound, bound)
    return W, b


def _make_mlp_params(key, in_dim, hidden, out_dim):
    k1, k2, k3, k4 = jax.random.split(key, 4)
    W1, b1 = _linear_init(k1, in_dim, hidden)
    W2, b2 = _linear_init(k2, hidden, hidden)
    W3, b3 = _linear_init(k3, hidden, hidden)
    W4, b4 = _linear_init(k4, hidden, out_dim)
    ones = jnp.ones((1, hidden), jnp.float32)   # LayerNorm weight
    zeros = jnp.zeros((1, hidden), jnp.float32)  # LayerNorm bias
    return [W1, b1, ones, zeros, W2, b2, ones, zeros,
            W3, b3, ones, zeros, W4, b4]


def pack_fused_params(actor_params, critic_params, lows, highs, *,
                      state_dim, hidden, action_dim,
                      weight_dtype=jnp.bfloat16):
    """Pack actor+critic parameters into 4 contiguous arrays for the kernel."""
    (aW1, ab1, ag1, abe1, aW2, ab2, ag2, abe2,
     aW3, ab3, ag3, abe3, aW4, ab4) = actor_params
    (cW1, cb1, cg1, cbe1, cW2, cb2, cg2, cbe2,
     cW3, cb3, cg3, cbe3, cW4, cb4) = critic_params

    H, A, H2 = hidden, action_dim, 2 * hidden
    assert action_dim + state_dim <= IN_PAD
    assert action_dim + 2 <= OUT_PAD
    assert H2 == 2 * OUT_PAD        # one bgb row must hold the full layer-4 bias

    # Layer 1: packed input row is [eps | state | 0]; eps lanes get zero rows
    # so the noise does not leak into the first matmul.
    W1p = jnp.zeros((IN_PAD, H2), jnp.float32)
    W1p = W1p.at[A:A + state_dim, :H].set(aW1).at[A:A + state_dim, H:].set(cW1)

    # Layers 2/3: block-diagonal 2H-wide (actor top-left, critic bottom-right).
    def blockdiag(a, c):
        m = jnp.zeros((H2, H2), jnp.float32)
        return m.at[:H, :H].set(a).at[H:, H:].set(c)
    W23 = jnp.stack([blockdiag(aW2, cW2), blockdiag(aW3, cW3)])

    # Layer 4 -> two lane-aligned 128-wide output blocks so means / log_stds /
    # eps all live in lanes 0..A-1 (no lane shuffling in-kernel):
    #   block M: actor means at lanes 0..A-1, critic value at lane A+1
    #   block S: actor log_stds at lanes 0..A-1
    W4p = jnp.zeros((H2, 2 * OUT_PAD), jnp.float32)
    W4p = W4p.at[:H, :A].set(aW4[:, :A])                    # means
    W4p = W4p.at[:H, OUT_PAD:OUT_PAD + A].set(aW4[:, A:])   # log_stds
    W4p = W4p.at[H:, A + 1:A + 2].set(cW4)                  # value

    cat = lambda a, c: jnp.concatenate([a, c], axis=-1)     # (1, 2H)
    b4row = jnp.zeros((1, 2 * OUT_PAD), jnp.float32)
    b4row = b4row.at[:, :A].set(ab4[:, :A])
    b4row = b4row.at[:, OUT_PAD:OUT_PAD + A].set(ab4[:, A:])
    b4row = b4row.at[:, A + 1:A + 2].set(cb4)

    lows = jnp.reshape(lows, (1, A)).astype(jnp.float32)
    highs = jnp.reshape(highs, (1, A)).astype(jnp.float32)
    midrow = jnp.zeros((1, H2), jnp.float32).at[:, :A].set(0.5 * (lows + highs))
    halfrow = jnp.zeros((1, H2), jnp.float32).at[:, :A].set(0.5 * (highs - lows))

    bgb = jnp.concatenate([
        cat(ab1, cb1), cat(ag1, cg1), cat(abe1, cbe1),
        cat(ab2, cb2), cat(ag2, cg2), cat(abe2, cbe2),
        cat(ab3, cb3), cat(ag3, cg3), cat(abe3, cbe3),
        b4row, midrow, halfrow,
        jnp.zeros((4, H2), jnp.float32),                     # pad to 16 rows
    ], axis=0)

    return (W1p.astype(weight_dtype), W23.astype(weight_dtype),
            W4p.astype(weight_dtype), bgb.astype(jnp.float32))


# -----------------------------------------------------------------------------
# Wrappers
# -----------------------------------------------------------------------------
def _pack_inputs(states, eps, *, state_dim, action_dim, rows):
    B = states.shape[0]
    xin = jnp.zeros((rows, IN_PAD), jnp.float32)
    xin = xin.at[:B, :action_dim].set(eps.astype(jnp.float32))
    xin = xin.at[:B, action_dim:action_dim + state_dim].set(states.astype(jnp.float32))
    return xin


def _fused_mxu_default():
    # 256-wide fused matmuls are native on v6e/v7x (256x256 MXU); on <=v5
    # (128x128 MXU) split the block-diagonal layers into 128-wide halves.
    try:
        kind = jax.devices()[0].device_kind.lower()
    except Exception:
        return True
    return not any(v in kind for v in ("v2", "v3", "v4", "v5"))


def ppo_forward(states, eps, packed, *, state_dim=STATE_DIM, hidden=HIDDEN_DIM,
                action_dim=ACTION_DIM, tile_b=None, fused_mxu=None):
    """Batched PPOAgent.forward.

    states: (B, state_dim), eps: (B, action_dim) N(0,1) noise
    -> actions (B, A), log_prob (B, 1), value (B, 1)
    """
    W1p, W23, W4p, bgb = packed
    B = states.shape[0]
    if fused_mxu is None:
        fused_mxu = _fused_mxu_default()
    if tile_b is None:
        # Big tiles amortize per-grid-step overhead; cap at 512 rows and keep
        # >=2 grid steps whenever possible so v7x can use both TensorCores.
        tile_b = max(8, min(512, _round_up(-(-B // 2), 8)))
    tile_b = _round_up(tile_b, 8)
    Bp = _round_up(max(B, tile_b), tile_b)

    xin = _pack_inputs(states, eps, state_dim=state_dim,
                       action_dim=action_dim, rows=Bp)

    kernel = functools.partial(ppo_fused_kernel, hidden=hidden,
                               action_dim=action_dim, fused=fused_mxu)
    out = pl.pallas_call(
        kernel,
        out_shape=jax.ShapeDtypeStruct((Bp, OUT_PAD), jnp.float32),
        grid=(Bp // tile_b,),
        in_specs=[
            # streamed per batch tile
            pl.BlockSpec((tile_b, IN_PAD), lambda i: (i, 0)),
            # parameters: constant block index -> DMA'd once, stay VMEM-resident
            pl.BlockSpec(W1p.shape, lambda i: (0, 0)),
            pl.BlockSpec(W23.shape, lambda i: (0, 0, 0)),
            pl.BlockSpec(W4p.shape, lambda i: (0, 0)),
            pl.BlockSpec(bgb.shape, lambda i: (0, 0)),
        ],
        out_specs=pl.BlockSpec((tile_b, OUT_PAD), lambda i: (i, 0)),
        compiler_params=pltpu.CompilerParams(
            dimension_semantics=("parallel",)),
    )(xin, W1p, W23, W4p, bgb)

    A = action_dim
    return out[:B, :A], out[:B, A:A + 1], out[:B, A + 1:A + 2]


def ppo_forward_single(state, eps, packed, **kw):
    """Single-state forward (matches the PyTorch module's return shapes)."""
    a, lp, v = ppo_forward(state.reshape(1, -1), eps.reshape(1, -1), packed, **kw)
    return a[0], lp[0], v[0]


def ppo_forward_packed_ref(states, eps, packed, *, state_dim=STATE_DIM,
                           hidden=HIDDEN_DIM, action_dim=ACTION_DIM,
                           fused_mxu=True):
    """Pure-JAX reference running the exact same packed (bf16) weights."""
    W1p, W23, W4p, bgb = packed
    B = states.shape[0]
    xin = _pack_inputs(states, eps, state_dim=state_dim,
                       action_dim=action_dim, rows=B)
    row = _forward_math(xin, W1p, W23[0], W23[1], W4p, bgb,
                        hidden=hidden, action_dim=action_dim, fused=fused_mxu)
    A = action_dim
    return row[:, :A], row[:, A:A + 1], row[:, A + 1:A + 2]


def ppo_forward_f32_ref(states, eps, actor_params, critic_params, lows, highs):
    """Straightforward f32 per-network reference (unpacked weights)."""
    def mlp(params, x):
        (W1, b1, g1, be1, W2, b2, g2, be2, W3, b3, g3, be3, W4, b4) = params

        def ln_relu(h, g, b):
            m = jnp.mean(h, -1, keepdims=True)
            v = jnp.mean((h - m) ** 2, -1, keepdims=True)
            return jnp.maximum((h - m) * jax.lax.rsqrt(v + _LN_EPS) * g + b, 0.0)

        h = ln_relu(x @ W1 + b1, g1, be1)
        h = ln_relu(h @ W2 + b2, g2, be2)
        h = ln_relu(h @ W3 + b3, g3, be3)
        return h @ W4 + b4

    raw = mlp(actor_params, states)
    A = eps.shape[-1]
    means, log_stds = raw[:, :A], jnp.clip(raw[:, A:], -5.0, 2.0)
    stds = jnp.exp(log_stds)
    value = mlp(critic_params, states)
    raw_action = means + stds * eps
    t = jnp.tanh(raw_action)
    lp = (-0.5 * ((raw_action - means) / stds) ** 2 - log_stds - _LOG_SQRT_2PI
          - jnp.log(1.0 - t * t + 1e-6))
    log_prob = jnp.sum(lp, -1, keepdims=True)
    actions = lows + (highs - lows) * (t + 1.0) / 2.0
    return actions, log_prob, value


# -----------------------------------------------------------------------------
if __name__ == "__main__":
    key = jax.random.PRNGKey(0)
    k_actor, k_critic, k_state, k_eps = jax.random.split(key, 4)

    actor_params = _make_mlp_params(k_actor, STATE_DIM, HIDDEN_DIM, 2 * ACTION_DIM)
    critic_params = _make_mlp_params(k_critic, STATE_DIM, HIDDEN_DIM, 1)
    lows = jnp.array([b[0] for b in ACTION_BOUNDS.values()], jnp.float32)
    highs = jnp.array([b[1] for b in ACTION_BOUNDS.values()], jnp.float32)

    packed = pack_fused_params(actor_params, critic_params, lows, highs,
                               state_dim=STATE_DIM, hidden=HIDDEN_DIM,
                               action_dim=ACTION_DIM)

    B = 64
    states = jax.random.normal(k_state, (B, STATE_DIM), jnp.float32)
    # TODO(synk): torch.distributions rsample RNG is not reproducible in JAX;
    # the N(0,1) noise is supplied deterministically from the host instead.
    eps = jax.random.normal(k_eps, (B, ACTION_DIM), jnp.float32)

    fused_mxu = _fused_mxu_default()
    actions, log_prob, value = ppo_forward(states, eps, packed, fused_mxu=fused_mxu)
    jax.block_until_ready((actions, log_prob, value))

    assert actions.shape == (B, ACTION_DIM)
    assert log_prob.shape == (B, 1)
    assert value.shape == (B, 1)
    assert bool(jnp.all(jnp.isfinite(actions)))
    assert bool(jnp.all(jnp.isfinite(log_prob)))
    assert bool(jnp.all(jnp.isfinite(value)))
    assert bool(jnp.all(actions >= lows[None, :] - 1e-5))
    assert bool(jnp.all(actions <= highs[None, :] + 1e-5))

    # 1) Kernel vs identical packed-bf16 math run through plain XLA.
    pa, plp, pv = ppo_forward_packed_ref(states, eps, packed, fused_mxu=fused_mxu)
    assert float(jnp.max(jnp.abs(actions - pa))) < 2e-3
    assert float(jnp.max(jnp.abs(value - pv))) < 2e-3
    assert float(jnp.max(jnp.abs(log_prob - plp))) < 2e-2

    # 2) Kernel vs a straightforward f32 per-network reference (checks the
    #    block-diagonal packing; tolerance covers bf16 weight quantization).
    fa, flp, fv = ppo_forward_f32_ref(states, eps, actor_params, critic_params,
                                      lows[None, :], highs[None, :])
    assert float(jnp.max(jnp.abs(actions - fa))) < 1.5e-1
    assert float(jnp.max(jnp.abs(value - fv))) < 2e-1
    assert float(jnp.max(jnp.abs(log_prob - flp))) < 1.0

    # Single-state path (PyTorch forward() shapes) is consistent with batched.
    a1, lp1, v1 = ppo_forward_single(states[0], eps[0], packed, fused_mxu=fused_mxu)
    assert a1.shape == (ACTION_DIM,) and lp1.shape == (1,) and v1.shape == (1,)
    assert float(jnp.max(jnp.abs(a1 - actions[0]))) < 1e-3

    print("KERNEL_OK")
</pallas_src>

<mosaic_0001>
module attributes {stable_mosaic.version = 11 : i64} {
  func.func @ppo_fused_kernel(%arg0: i32, %arg1: memref<32x128xf32, #tpu.memory_space<vmem>>, %arg2: memref<128x256xbf16, #tpu.memory_space<vmem>>, %arg3: memref<2x256x256xbf16, #tpu.memory_space<vmem>>, %arg4: memref<256x256xbf16, #tpu.memory_space<vmem>>, %arg5: memref<16x256xf32, #tpu.memory_space<vmem>>, %arg6: memref<32x128xf32, #tpu.memory_space<vmem>>) attributes {dimension_semantics = [#tpu.dimension_semantics<parallel>], iteration_bounds = array<i64: 2>, scalar_prefetch = 0 : i64, scratch_operands = 0 : i64, tpu.core_type = #tpu.core_type<tc>, window_params = [{transform_indices = @transform_0, window_bounds = array<i64: 32, 128>}, {pipeline_mode = #tpu.pipeline_mode<synchronous>, transform_indices = @transform_1, window_bounds = array<i64: 128, 256>}, {pipeline_mode = #tpu.pipeline_mode<synchronous>, transform_indices = @transform_2, window_bounds = array<i64: 2, 256, 256>}, {pipeline_mode = #tpu.pipeline_mode<synchronous>, transform_indices = @transform_3, window_bounds = array<i64: 256, 256>}, {pipeline_mode = #tpu.pipeline_mode<synchronous>, transform_indices = @transform_4, window_bounds = array<i64: 16, 256>}, {transform_indices = @transform_5, window_bounds = array<i64: 32, 128>}]} {
    %c0 = arith.constant 0 : index
    %c0_0 = arith.constant 0 : index
    %0 = vector.load %arg1[%c0, %c0_0] : memref<32x128xf32, #tpu.memory_space<vmem>>, vector<32x128xf32>
    %c0_1 = arith.constant 0 : index
    %c0_2 = arith.constant 0 : index
    %1 = vector.load %arg2[%c0_1, %c0_2] : memref<128x256xbf16, #tpu.memory_space<vmem>>, vector<128x256xbf16>
    %c0_3 = arith.constant 0 : index
    %c0_4 = arith.constant 0 : index
    %c0_5 = arith.constant 0 : index
    %2 = vector.load %arg3[%c0_3, %c0_4, %c0_5] : memref<2x256x256xbf16, #tpu.memory_space<vmem>>, vector<1x256x256xbf16>
    %3 = vector.shape_cast %2 : vector<1x256x256xbf16> to vector<256x256xbf16>
    %c1 = arith.constant 1 : index
    %c0_6 = arith.constant 0 : index
    %c0_7 = arith.constant 0 : index
    %4 = vector.load %arg3[%c1, %c0_6, %c0_7] : memref<2x256x256xbf16, #tpu.memory_space<vmem>>, vector<1x256x256xbf16>
    %5 = vector.shape_cast %4 : vector<1x256x256xbf16> to vector<256x256xbf16>
    %c0_8 = arith.constant 0 : index
    %c0_9 = arith.constant 0 : index
    %6 = vector.load %arg4[%c0_8, %c0_9] : memref<256x256xbf16, #tpu.memory_space<vmem>>, vector<256x256xbf16>
    %c0_10 = arith.constant 0 : index
    %c0_11 = arith.constant 0 : index
    %7 = vector.load %arg5[%c0_10, %c0_11] : memref<16x256xf32, #tpu.memory_space<vmem>>, vector<16x256xf32>
    %8 = vector.extract_strided_slice %7 {offsets = [0, 0], sizes = [1, 256], strides = [1, 1]} : vector<16x256xf32> to vector<1x256xf32>
    %9 = vector.extract_strided_slice %7 {offsets = [1, 0], sizes = [1, 256], strides = [1, 1]} : vector<16x256xf32> to vector<1x256xf32>
    %10 = vector.extract_strided_slice %7 {offsets = [2, 0], sizes = [1, 256], strides = [1, 1]} : vector<16x256xf32> to vector<1x256xf32>
    %11 = arith.truncf %0 : vector<32x128xf32> to vector<32x128xbf16>
    %cst = arith.constant dense<0.000000e+00> : vector<32x256xf32>
    %12 = tpu.matmul %11, %1, %cst {dimension_numbers = #tpu.dot_dimension_numbers<[1], [0], [0], [1], [0, 0, 1, 1], [], []>} : vector<32x128xbf16>, vector<128x256xbf16>, vector<32x256xf32> -> vector<32x256xf32>
    %13 = vector.broadcast %8 : vector<1x256xf32> to vector<32x256xf32>
    %14 = arith.addf %12, %13 : vector<32x256xf32>
    %15 = vector.extract_strided_slice %14 {offsets = [0, 0], sizes = [32, 128], strides = [1, 1]} : vector<32x256xf32> to vector<32x128xf32>
    %16 = vector.extract_strided_slice %9 {offsets = [0, 0], sizes = [1, 128], strides = [1, 1]} : vector<1x256xf32> to vector<1x128xf32>
    %17 = vector.extract_strided_slice %10 {offsets = [0, 0], sizes = [1, 128], strides = [1, 1]} : vector<1x256xf32> to vector<1x128xf32>
    %cst_12 = arith.constant dense<0.000000e+00> : vector<32xf32>
    %18 = vector.multi_reduction <add>, %15, %cst_12 [1] : vector<32x128xf32> to vector<32xf32>
    %19 = vector.shape_cast %18 : vector<32xf32> to vector<32x1xf32>
    %cst_13 = arith.constant 1.280000e+02 : f32
    %20 = vector.broadcast %cst_13 : f32 to vector<32x1xf32>
    %21 = arith.divf %19, %20 : vector<32x1xf32>
    %22 = arith.mulf %15, %15 : vector<32x128xf32>
    %cst_14 = arith.constant dense<0.000000e+00> : vector<32xf32>
    %23 = vector.multi_reduction <add>, %22, %cst_14 [1] : vector<32x128xf32> to vector<32xf32>
    %24 = vector.shape_cast %23 : vector<32xf32> to vector<32x1xf32>
    %cst_15 = arith.constant 1.280000e+02 : f32
    %25 = vector.broadcast %cst_15 : f32 to vector<32x1xf32>
    %26 = arith.divf %24, %25 : vector<32x1xf32>
    %27 = arith.mulf %21, %21 : vector<32x1xf32>
    %28 = arith.subf %26, %27 : vector<32x1xf32>
    %cst_16 = arith.constant 0.000000e+00 : f32
    %29 = vector.broadcast %cst_16 : f32 to vector<32x1xf32>
    %30 = arith.maximumf %28, %29 : vector<32x1xf32>
    %cst_17 = arith.constant 9.99999974E-6 : f32
    %31 = vector.broadcast %cst_17 : f32 to vector<32x1xf32>
    %32 = arith.addf %30, %31 : vector<32x1xf32>
    %33 = math.rsqrt %32 : vector<32x1xf32>
    %34 = vector.broadcast %21 : vector<32x1xf32> to vector<32x128xf32>
    %35 = arith.subf %15, %34 : vector<32x128xf32>
    %36 = vector.broadcast %33 : vector<32x1xf32> to vector<32x128xf32>
    %37 = arith.mulf %35, %36 : vector<32x128xf32>
    %38 = vector.broadcast %16 : vector<1x128xf32> to vector<32x128xf32>
    %39 = arith.mulf %37, %38 : vector<32x128xf32>
    %40 = vector.broadcast %17 : vector<1x128xf32> to vector<32x128xf32>
    %41 = arith.addf %39, %40 : vector<32x128xf32>
    %cst_18 = arith.constant 0.000000e+00 : f32
    %42 = vector.broadcast %cst_18 : f32 to vector<32x128xf32>
    %43 = arith.maximumf %41, %42 : vector<32x128xf32>
    %44 = vector.extract_strided_slice %14 {offsets = [0, 128], sizes = [32, 128], strides = [1, 1]} : vector<32x256xf32> to vector<32x128xf32>
    %45 = vector.extract_strided_slice %9 {offsets = [0, 128], sizes = [1, 128], strides = [1, 1]} : vector<1x256xf32> to vector<1x128xf32>
    %46 = vector.extract_strided_slice %10 {offsets = [0, 128], sizes = [1, 128], strides = [1, 1]} : vector<1x256xf32> to vector<1x128xf32>
    %cst_19 = arith.constant dense<0.000000e+00> : vector<32xf32>
    %47 = vector.multi_reduction <add>, %44, %cst_19 [1] : vector<32x128xf32> to vector<32xf32>
    %48 = vector.shape_cast %47 : vector<32xf32> to vector<32x1xf32>
    %cst_20 = arith.constant 1.280000e+02 : f32
    %49 = vector.broadcast %cst_20 : f32 to vector<32x1xf32>
    %50 = arith.divf %48, %49 : vector<32x1xf32>
    %51 = arith.mulf %44, %44 : vector<32x128xf32>
    %cst_21 = arith.constant dense<0.000000e+00> : vector<32xf32>
    %52 = vector.multi_reduction <add>, %51, %cst_21 [1] : vector<32x128xf32> to vector<32xf32>
    %53 = vector.shape_cast %52 : vector<32xf32> to vector<32x1xf32>
    %cst_22 = arith.constant 1.280000e+02 : f32
    %54 = vector.broadcast %cst_22 : f32 to vector<32x1xf32>
    %55 = arith.divf %53, %54 : vector<32x1xf32>
    %56 = arith.mulf %50, %50 : vector<32x1xf32>
    %57 = arith.subf %55, %56 : vector<32x1xf32>
    %cst_23 = arith.constant 0.000000e+00 : f32
    %58 = vector.broadcast %cst_23 : f32 to vector<32x1xf32>
    %59 = arith.maximumf %57, %58 : vector<32x1xf32>
    %cst_24 = arith.constant 9.99999974E-6 : f32
    %60 = vector.broadcast %cst_24 : f32 to vector<32x1xf32>
    %61 = arith.addf %59, %60 : vector<32x1xf32>
    %62 = math.rsqrt %61 : vector<32x1xf32>
    %63 = vector.broadcast %50 : vector<32x1xf32> to vector<32x128xf32>
    %64 = arith.subf %44, %63 : vector<32x128xf32>
    %65 = vector.broadcast %62 : vector<32x1xf32> to vector<32x128xf32>
    %66 = arith.mulf %64, %65 : vector<32x128xf32>
    %67 = vector.broadcast %45 : vector<1x128xf32> to vector<32x128xf32>
    %68 = arith.mulf %66, %67 : vector<32x128xf32>
    %69 = vector.broadcast %46 : vector<1x128xf32> to vector<32x128xf32>
    %70 = arith.addf %68, %69 : vector<32x128xf32>
    %cst_25 = arith.constant 0.000000e+00 : f32
    %71 = vector.broadcast %cst_25 : f32 to vector<32x128xf32>
    %72 = arith.maximumf %70, %71 : vector<32x128xf32>
    %73 = vector.extract_strided_slice %7 {offsets = [3, 0], sizes = [1, 256], strides = [1, 1]} : vector<16x256xf32> to vector<1x256xf32>
    %74 = vector.extract_strided_slice %7 {offsets = [4, 0], sizes = [1, 256], strides = [1, 1]} : vector<16x256xf32> to vector<1x256xf32>
    %75 = vector.extract_strided_slice %7 {offsets = [5, 0], sizes = [1, 256], strides = [1, 1]} : vector<16x256xf32> to vector<1x256xf32>
    %76 = tpu.concatenate %43, %72 in 1 : vector<32x128xf32>, vector<32x128xf32> -> vector<32x256xf32>
    %77 = arith.truncf %76 : vector<32x256xf32> to vector<32x256xbf16>
    %cst_26 = arith.constant dense<0.000000e+00> : vector<32x256xf32>
    %78 = tpu.matmul %77, %3, %cst_26 {dimension_numbers = #tpu.dot_dimension_numbers<[1], [0], [0], [1], [0, 0, 1, 1], [], []>} : vector<32x256xbf16>, vector<256x256xbf16>, vector<32x256xf32> -> vector<32x256xf32>
    %79 = vector.broadcast %73 : vector<1x256xf32> to vector<32x256xf32>
    %80 = arith.addf %78, %79 : vector<32x256xf32>
    %81 = vector.extract_strided_slice %80 {offsets = [0, 0], sizes = [32, 128], strides = [1, 1]} : vector<32x256xf32> to vector<32x128xf32>
    %82 = vector.extract_strided_slice %80 {offsets = [0, 128], sizes = [32, 128], strides = [1, 1]} : vector<32x256xf32> to vector<32x128xf32>
    %83 = vector.extract_strided_slice %74 {offsets = [0, 0], sizes = [1, 128], strides = [1, 1]} : vector<1x256xf32> to vector<1x128xf32>
    %84 = vector.extract_strided_slice %75 {offsets = [0, 0], sizes = [1, 128], strides = [1, 1]} : vector<1x256xf32> to vector<1x128xf32>
    %cst_27 = arith.constant dense<0.000000e+00> : vector<32xf32>
    %85 = vector.multi_reduction <add>, %81, %cst_27 [1] : vector<32x128xf32> to vector<32xf32>
    %86 = vector.shape_cast %85 : vector<32xf32> to vector<32x1xf32>
    %cst_28 = arith.constant 1.280000e+02 : f32
    %87 = vector.broadcast %cst_28 : f32 to vector<32x1xf32>
    %88 = arith.divf %86, %87 : vector<32x1xf32>
    %89 = arith.mulf %81, %81 : vector<32x128xf32>
    %cst_29 = arith.constant dense<0.000000e+00> : vector<32xf32>
    %90 = vector.multi_reduction <add>, %89, %cst_29 [1] : vector<32x128xf32> to vector<32xf32>
    %91 = vector.shape_cast %90 : vector<32xf32> to vector<32x1xf32>
    %cst_30 = arith.constant 1.280000e+02 : f32
    %92 = vector.broadcast %cst_30 : f32 to vector<32x1xf32>
    %93 = arith.divf %91, %92 : vector<32x1xf32>
    %94 = arith.mulf %88, %88 : vector<32x1xf32>
    %95 = arith.subf %93, %94 : vector<32x1xf32>
    %cst_31 = arith.constant 0.000000e+00 : f32
    %96 = vector.broadcast %cst_31 : f32 to vector<32x1xf32>
    %97 = arith.maximumf %95, %96 : vector<32x1xf32>
    %cst_32 = arith.constant 9.99999974E-6 : f32
    %98 = vector.broadcast %cst_32 : f32 to vector<32x1xf32>
    %99 = arith.addf %97, %98 : vector<32x1xf32>
    %100 = math.rsqrt %99 : vector<32x1xf32>
    %101 = vector.broadcast %88 : vector<32x1xf32> to vector<32x128xf32>
    %102 = arith.subf %81, %101 : vector<32x128xf32>
    %103 = vector.broadcast %100 : vector<32x1xf32> to vector<32x128xf32>
    %104 = arith.mulf %102, %103 : vector<32x128xf32>
    %105 = vector.broadcast %83 : vector<1x128xf32> to vector<32x128xf32>
    %106 = arith.mulf %104, %105 : vector<32x128xf32>
    %107 = vector.broadcast %84 : vector<1x128xf32> to vector<32x128xf32>
    %108 = arith.addf %106, %107 : vector<32x128xf32>
    %cst_33 = arith.constant 0.000000e+00 : f32
    %109 = vector.broadcast %cst_33 : f32 to vector<32x128xf32>
    %110 = arith.maximumf %108, %109 : vector<32x128xf32>
    %111 = vector.extract_strided_slice %74 {offsets = [0, 128], sizes = [1, 128], strides = [1, 1]} : vector<1x256xf32> to vector<1x128xf32>
    %112 = vector.extract_strided_slice %75 {offsets = [0, 128], sizes = [1, 128], strides = [1, 1]} : vector<1x256xf32> to vector<1x128xf32>
    %cst_34 = arith.constant dense<0.000000e+00> : vector<32xf32>
    %113 = vector.multi_reduction <add>, %82, %cst_34 [1] : vector<32x128xf32> to vector<32xf32>
    %114 = vector.shape_cast %113 : vector<32xf32> to vector<32x1xf32>
    %cst_35 = arith.constant 1.280000e+02 : f32
    %115 = vector.broadcast %cst_35 : f32 to vector<32x1xf32>
    %116 = arith.divf %114, %115 : vector<32x1xf32>
    %117 = arith.mulf %82, %82 : vector<32x128xf32>
    %cst_36 = arith.constant dense<0.000000e+00> : vector<32xf32>
    %118 = vector.multi_reduction <add>, %117, %cst_36 [1] : vector<32x128xf32> to vector<32xf32>
    %119 = vector.shape_cast %118 : vector<32xf32> to vector<32x1xf32>
    %cst_37 = arith.constant 1.280000e+02 : f32
    %120 = vector.broadcast %cst_37 : f32 to vector<32x1xf32>
    %121 = arith.divf %119, %120 : vector<32x1xf32>
    %122 = arith.mulf %116, %116 : vector<32x1xf32>
    %123 = arith.subf %121, %122 : vector<32x1xf32>
    %cst_38 = arith.constant 0.000000e+00 : f32
    %124 = vector.broadcast %cst_38 : f32 to vector<32x1xf32>
    %125 = arith.maximumf %123, %124 : vector<32x1xf32>
    %cst_39 = arith.constant 9.99999974E-6 : f32
    %126 = vector.broadcast %cst_39 : f32 to vector<32x1xf32>
    %127 = arith.addf %125, %126 : vector<32x1xf32>
    %128 = math.rsqrt %127 : vector<32x1xf32>
    %129 = vector.broadcast %116 : vector<32x1xf32> to vector<32x128xf32>
    %130 = arith.subf %82, %129 : vector<32x128xf32>
    %131 = vector.broadcast %128 : vector<32x1xf32> to vector<32x128xf32>
    %132 = arith.mulf %130, %131 : vector<32x128xf32>
    %133 = vector.broadcast %111 : vector<1x128xf32> to vector<32x128xf32>
    %134 = arith.mulf %132, %133 : vector<32x128xf32>
    %135 = vector.broadcast %112 : vector<1x128xf32> to vector<32x128xf32>
    %136 = arith.addf %134, %135 : vector<32x128xf32>
    %cst_40 = arith.constant 0.000000e+00 : f32
    %137 = vector.broadcast %cst_40 : f32 to vector<32x128xf32>
    %138 = arith.maximumf %136, %137 : vector<32x128xf32>
    %139 = vector.extract_strided_slice %7 {offsets = [6, 0], sizes = [1, 256], strides = [1, 1]} : vector<16x256xf32> to vector<1x256xf32>
    %140 = vector.extract_strided_slice %7 {offsets = [7, 0], sizes = [1, 256], strides = [1, 1]} : vector<16x256xf32> to vector<1x256xf32>
    %141 = vector.extract_strided_slice %7 {offsets = [8, 0], sizes = [1, 256], strides = [1, 1]} : vector<16x256xf32> to vector<1x256xf32>
    %142 = tpu.concatenate %110, %138 in 1 : vector<32x128xf32>, vector<32x128xf32> -> vector<32x256xf32>
    %143 = arith.truncf %142 : vector<32x256xf32> to vector<32x256xbf16>
    %cst_41 = arith.constant dense<0.000000e+00> : vector<32x256xf32>
    %144 = tpu.matmul %143, %5, %cst_41 {dimension_numbers = #tpu.dot_dimension_numbers<[1], [0], [0], [1], [0, 0, 1, 1], [], []>} : vector<32x256xbf16>, vector<256x256xbf16>, vector<32x256xf32> -> vector<32x256xf32>
    %145 = vector.broadcast %139 : vector<1x256xf32> to vector<32x256xf32>
    %146 = arith.addf %144, %145 : vector<32x256xf32>
    %147 = vector.extract_strided_slice %146 {offsets = [0, 0], sizes = [32, 128], strides = [1, 1]} : vector<32x256xf32> to vector<32x128xf32>
    %148 = vector.extract_strided_slice %146 {offsets = [0, 128], sizes = [32, 128], strides = [1, 1]} : vector<32x256xf32> to vector<32x128xf32>
    %149 = vector.extract_strided_slice %140 {offsets = [0, 0], sizes = [1, 128], strides = [1, 1]} : vector<1x256xf32> to vector<1x128xf32>
    %150 = vector.extract_strided_slice %141 {offsets = [0, 0], sizes = [1, 128], strides = [1, 1]} : vector<1x256xf32> to vector<1x128xf32>
    %cst_42 = arith.constant dense<0.000000e+00> : vector<32xf32>
    %151 = vector.multi_reduction <add>, %147, %cst_42 [1] : vector<32x128xf32> to vector<32xf32>
    %152 = vector.shape_cast %151 : vector<32xf32> to vector<32x1xf32>
    %cst_43 = arith.constant 1.280000e+02 : f32
    %153 = vector.broadcast %cst_43 : f32 to vector<32x1xf32>
    %154 = arith.divf %152, %153 : vector<32x1xf32>
    %155 = arith.mulf %147, %147 : vector<32x128xf32>
    %cst_44 = arith.constant dense<0.000000e+00> : vector<32xf32>
    %156 = vector.multi_reduction <add>, %155, %cst_44 [1] : vector<32x128xf32> to vector<32xf32>
    %157 = vector.shape_cast %156 : vector<32xf32> to vector<32x1xf32>
    %cst_45 = arith.constant 1.280000e+02 : f32
    %158 = vector.broadcast %cst_45 : f32 to vector<32x1xf32>
    %159 = arith.divf %157, %158 : vector<32x1xf32>
    %160 = arith.mulf %154, %154 : vector<32x1xf32>
    %161 = arith.subf %159, %160 : vector<32x1xf32>
    %cst_46 = arith.constant 0.000000e+00 : f32
    %162 = vector.broadcast %cst_46 : f32 to vector<32x1xf32>
    %163 = arith.maximumf %161, %162 : vector<32x1xf32>
    %cst_47 = arith.constant 9.99999974E-6 : f32
    %164 = vector.broadcast %cst_47 : f32 to vector<32x1xf32>
    %165 = arith.addf %163, %164 : vector<32x1xf32>
    %166 = math.rsqrt %165 : vector<32x1xf32>
    %167 = vector.broadcast %154 : vector<32x1xf32> to vector<32x128xf32>
    %168 = arith.subf %147, %167 : vector<32x128xf32>
    %169 = vector.broadcast %166 : vector<32x1xf32> to vector<32x128xf32>
    %170 = arith.mulf %168, %169 : vector<32x128xf32>
    %171 = vector.broadcast %149 : vector<1x128xf32> to vector<32x128xf32>
    %172 = arith.mulf %170, %171 : vector<32x128xf32>
    %173 = vector.broadcast %150 : vector<1x128xf32> to vector<32x128xf32>
    %174 = arith.addf %172, %173 : vector<32x128xf32>
    %cst_48 = arith.constant 0.000000e+00 : f32
    %175 = vector.broadcast %cst_48 : f32 to vector<32x128xf32>
    %176 = arith.maximumf %174, %175 : vector<32x128xf32>
    %177 = vector.extract_strided_slice %140 {offsets = [0, 128], sizes = [1, 128], strides = [1, 1]} : vector<1x256xf32> to vector<1x128xf32>
    %178 = vector.extract_strided_slice %141 {offsets = [0, 128], sizes = [1, 128], strides = [1, 1]} : vector<1x256xf32> to vector<1x128xf32>
    %cst_49 = arith.constant dense<0.000000e+00> : vector<32xf32>
    %179 = vector.multi_reduction <add>, %148, %cst_49 [1] : vector<32x128xf32> to vector<32xf32>
    %180 = vector.shape_cast %179 : vector<32xf32> to vector<32x1xf32>
    %cst_50 = arith.constant 1.280000e+02 : f32
    %181 = vector.broadcast %cst_50 : f32 to vector<32x1xf32>
    %182 = arith.divf %180, %181 : vector<32x1xf32>
    %183 = arith.mulf %148, %148 : vector<32x128xf32>
    %cst_51 = arith.constant dense<0.000000e+00> : vector<32xf32>
    %184 = vector.multi_reduction <add>, %183, %cst_51 [1] : vector<32x128xf32> to vector<32xf32>
    %185 = vector.shape_cast %184 : vector<32xf32> to vector<32x1xf32>
    %cst_52 = arith.constant 1.280000e+02 : f32
    %186 = vector.broadcast %cst_52 : f32 to vector<32x1xf32>
    %187 = arith.divf %185, %186 : vector<32x1xf32>
    %188 = arith.mulf %182, %182 : vector<32x1xf32>
    %189 = arith.subf %187, %188 : vector<32x1xf32>
    %cst_53 = arith.constant 0.000000e+00 : f32
    %190 = vector.broadcast %cst_53 : f32 to vector<32x1xf32>
    %191 = arith.maximumf %189, %190 : vector<32x1xf32>
    %cst_54 = arith.constant 9.99999974E-6 : f32
    %192 = vector.broadcast %cst_54 : f32 to vector<32x1xf32>
    %193 = arith.addf %191, %192 : vector<32x1xf32>
    %194 = math.rsqrt %193 : vector<32x1xf32>
    %195 = vector.broadcast %182 : vector<32x1xf32> to vector<32x128xf32>
    %196 = arith.subf %148, %195 : vector<32x128xf32>
    %197 = vector.broadcast %194 : vector<32x1xf32> to vector<32x128xf32>
    %198 = arith.mulf %196, %197 : vector<32x128xf32>
    %199 = vector.broadcast %177 : vector<1x128xf32> to vector<32x128xf32>
    %200 = arith.mulf %198, %199 : vector<32x128xf32>
    %201 = vector.broadcast %178 : vector<1x128xf32> to vector<32x128xf32>
    %202 = arith.addf %200, %201 : vector<32x128xf32>
    %cst_55 = arith.constant 0.000000e+00 : f32
    %203 = vector.broadcast %cst_55 : f32 to vector<32x128xf32>
    %204 = arith.maximumf %202, %203 : vector<32x128xf32>
    %205 = vector.extract_strided_slice %7 {offsets = [9, 0], sizes = [1, 256], strides = [1, 1]} : vector<16x256xf32> to vector<1x256xf32>
    %206 = tpu.concatenate %176, %204 in 1 : vector<32x128xf32>, vector<32x128xf32> -> vector<32x256xf32>
    %207 = arith.truncf %206 : vector<32x256xf32> to vector<32x256xbf16>
    %cst_56 = arith.constant dense<0.000000e+00> : vector<32x256xf32>
    %208 = tpu.matmul %207, %6, %cst_56 {dimension_numbers = #tpu.dot_dimension_numbers<[1], [0], [0], [1], [0, 0, 1, 1], [], []>} : vector<32x256xbf16>, vector<256x256xbf16>, vector<32x256xf32> -> vector<32x256xf32>
    %209 = vector.broadcast %205 : vector<1x256xf32> to vector<32x256xf32>
    %210 = arith.addf %208, %209 : vector<32x256xf32>
    %211 = vector.extract_strided_slice %210 {offsets = [0, 0], sizes = [32, 128], strides = [1, 1]} : vector<32x256xf32> to vector<32x128xf32>
    %212 = vector.extract_strided_slice %210 {offsets = [0, 128], sizes = [32, 128], strides = [1, 1]} : vector<32x256xf32> to vector<32x128xf32>
    %cst_57 = arith.constant -5.000000e+00 : f32
    %cst_58 = arith.constant 2.000000e+00 : f32
    %213 = vector.broadcast %cst_57 : f32 to vector<32x128xf32>
    %214 = arith.maximumf %213, %212 : vector<32x128xf32>
    %215 = vector.broadcast %cst_58 : f32 to vector<32x128xf32>
    %216 = arith.minimumf %215, %214 : vector<32x128xf32>
    %217 = math.exp %216 : vector<32x128xf32>
    %218 = arith.mulf %217, %0 : vector<32x128xf32>
    %219 = arith.addf %211, %218 : vector<32x128xf32>
    %220 = math.tanh %219 : vector<32x128xf32>
    %221 = tpu.iota {dimensions = array<i32: 1>} : vector<32x128xi32>
    %c3_i32 = arith.constant 3 : i32
    %222 = vector.broadcast %c3_i32 : i32 to vector<32x128xi32>
    %223 = arith.cmpi slt, %221, %222 : vector<32x128xi32>
    %cst_59 = arith.constant -5.000000e-01 : f32
    %224 = vector.broadcast %cst_59 : f32 to vector<32x128xf32>
    %225 = arith.mulf %224, %0 : vector<32x128xf32>
    %226 = arith.mulf %225, %0 : vector<32x128xf32>
    %227 = arith.subf %226, %216 : vector<32x128xf32>
    %cst_60 = arith.constant 0.918938517 : f32
    %228 = vector.broadcast %cst_60 : f32 to vector<32x128xf32>
    %229 = arith.subf %227, %228 : vector<32x128xf32>
    %230 = arith.mulf %220, %220 : vector<32x128xf32>
    %cst_61 = arith.constant 1.000000e+00 : f32
    %231 = vector.broadcast %cst_61 : f32 to vector<32x128xf32>
    %232 = arith.subf %231, %230 : vector<32x128xf32>
    %cst_62 = arith.constant 9.99999997E-7 : f32
    %233 = vector.broadcast %cst_62 : f32 to vector<32x128xf32>
    %234 = arith.addf %232, %233 : vector<32x128xf32>
    %235 = math.log %234 : vector<32x128xf32>
    %236 = arith.subf %229, %235 : vector<32x128xf32>
    %cst_63 = arith.constant 0.000000e+00 : f32
    %237 = vector.broadcast %cst_63 : f32 to vector<32x128xf32>
    %238 = arith.select %223, %236, %237 : vector<32x128xi1>, vector<32x128xf32>
    %cst_64 = arith.constant dense<0.000000e+00> : vector<32xf32>
    %239 = vector.multi_reduction <add>, %238, %cst_64 [1] : vector<32x128xf32> to vector<32xf32>
    %240 = vector.shape_cast %239 : vector<32xf32> to vector<32x1xf32>
    %241 = vector.extract_strided_slice %7 {offsets = [10, 0], sizes = [1, 128], strides = [1, 1]} : vector<16x256xf32> to vector<1x128xf32>
    %242 = vector.extract_strided_slice %7 {offsets = [11, 0], sizes = [1, 128], strides = [1, 1]} : vector<16x256xf32> to vector<1x128xf32>
    %243 = vector.broadcast %242 : vector<1x128xf32> to vector<32x128xf32>
    %244 = arith.mulf %243, %220 : vector<32x128xf32>
    %245 = vector.broadcast %241 : vector<1x128xf32> to vector<32x128xf32>
    %246 = arith.addf %245, %244 : vector<32x128xf32>
    %c4_i32 = arith.constant 4 : i32
    %247 = vector.broadcast %c4_i32 : i32 to vector<32x128xi32>
    %248 = arith.cmpi eq, %221, %247 : vector<32x128xi32>
    %cst_65 = arith.constant 0.000000e+00 : f32
    %249 = vector.broadcast %cst_65 : f32 to vector<32x128xf32>
    %250 = arith.select %248, %211, %249 : vector<32x128xi1>, vector<32x128xf32>
    %251 = arith.select %223, %246, %250 : vector<32x128xi1>, vector<32x128xf32>
    %c3_i32_66 = arith.constant 3 : i32
    %252 = vector.broadcast %c3_i32_66 : i32 to vector<32x128xi32>
    %253 = arith.cmpi eq, %221, %252 : vector<32x128xi32>
    %254 = vector.shape_cast %240 : vector<32x1xf32> to vector<32x1xf32>
    %255 = vector.broadcast %254 : vector<32x1xf32> to vector<32x128xf32>
    %256 = arith.select %253, %255, %251 : vector<32x128xi1>, vector<32x128xf32>
    %c0_67 = arith.constant 0 : index
    %c0_68 = arith.constant 0 : index
    %257 = vector.load %arg6[%c0_67, %c0_68] : memref<32x128xf32, #tpu.memory_space<vmem>>, vector<32x128xf32>
    tpu.vector_store %arg6[%c0_67, %c0_68], %256 {strides = array<i32>} : memref<32x128xf32, #tpu.memory_space<vmem>>, vector<32x128xf32>,
    return
  }
  func.func @transform_0(%arg0: i32) -> (i32, i32) {
    %c0_i32 = arith.constant 0 : i32
    %c0_i32_0 = arith.constant 0 : i32
    return %arg0, %c0_i32 : i32, i32
  }
  func.func @transform_1(%arg0: i32) -> (i32, i32) {
    %c0_i32 = arith.constant 0 : i32
    %c0_i32_0 = arith.constant 0 : i32
    %c0_i32_1 = arith.constant 0 : i32
    return %c0_i32, %c0_i32_0 : i32, i32
  }
  func.func @transform_2(%arg0: i32) -> (i32, i32, i32) {
    %c0_i32 = arith.constant 0 : i32
    %c0_i32_0 = arith.constant 0 : i32
    %c0_i32_1 = arith.constant 0 : i32
    %c0_i32_2 = arith.constant 0 : i32
    return %c0_i32, %c0_i32_0, %c0_i32_1 : i32, i32, i32
  }
  func.func @transform_3(%arg0: i32) -> (i32, i32) {
    %c0_i32 = arith.constant 0 : i32
    %c0_i32_0 = arith.constant 0 : i32
    %c0_i32_1 = arith.constant 0 : i32
    return %c0_i32, %c0_i32_0 : i32, i32
  }
  func.func @transform_4(%arg0: i32) -> (i32, i32) {
    %c0_i32 = arith.constant 0 : i32
    %c0_i32_0 = arith.constant 0 : i32
    %c0_i32_1 = arith.constant 0 : i32
    return %c0_i32, %c0_i32_0 : i32, i32
  }
  func.func @transform_5(%arg0: i32) -> (i32, i32) {
    %c0_i32 = arith.constant 0 : i32
    %c0_i32_0 = arith.constant 0 : i32
    return %arg0, %c0_i32 : i32, i32
  }
}

</mosaic_0001>

<llo_original>
// kernel: tpu_custom_call.1
$region0: #{tpu_custom_call.1}
  #allocation0 [shape = 'u32[]', space=smem, size = 0x4, offset = 0x4, fixed_abs, tag = 'smem constant byte address 0x4 - core index']
  #allocation1 [shape = 'u32[144,128]{1,0:T(1,128)}', space=vmem, size = 0x12000, scoped, tag = 'internal scratch']
  %s0 = inlined_call_operand.hbm [shape: f32[64,128], index: 0, kind: input, shape index: {}]
  %s1 = inlined_call_operand.hbm [shape: bf16[128,256], index: 1, kind: input, shape index: {}]
  %s2 = inlined_call_operand.hbm [shape: bf16[2,256,256], index: 2, kind: input, shape index: {}]
  %s3 = inlined_call_operand.hbm [shape: bf16[256,256], index: 3, kind: input, shape index: {}]
  %s4 = inlined_call_operand.hbm [shape: f32[16,256], index: 4, kind: input, shape index: {}]
  %s5 = inlined_call_operand.hbm [shape: f32[64,128], index: 5, kind: output, shape index: {}]
  %s6 = sld [smem:[#allocation0]]
  $region73: #{tpu_custom_call.1} parent=0
    _
  %s8 = ssub.s32 1, %s6
  %s9 = scalar_select 0, %s8, %s6
  $region1: #{tpu_custom_call.1} parent=0
    #allocation2 [shape = 'u8[32768]{0}', space=vmem, size = 0x8000, scoped, tag = 'input window, operand 0']
    #allocation3 [shape = 's32[2]{0}', space=sflag, size = 0x8, scoped, tag = 'scoped memory for tpu_custom_call.1']
    #allocation4 [shape = 's32[2]{0}', space=sflag, size = 0x8, scoped, tag = 'scoped memory for tpu_custom_call.1']
    #allocation5 [shape = 'u8[65536]{0}', space=vmem, size = 0x10000, scoped, tag = 'input window, operand 1, single buffered']
    #allocation6 [shape = 's32[1]{0}', space=sflag, size = 0x4, scoped, tag = 'scoped memory for tpu_custom_call.1']
    #allocation7 [shape = 'u8[262144]{0}', space=vmem, size = 0x40000, scoped, tag = 'input window, operand 2, single buffered']
    #allocation8 [shape = 'u8[131072]{0}', space=vmem, size = 0x20000, scoped, tag = 'input window, operand 3, single buffered']
    #allocation9 [shape = 's32[1]{0}', space=sflag, size = 0x4, scoped, tag = 'scoped memory for tpu_custom_call.1']
    #allocation10 [shape = 'u8[16384]{0}', space=vmem, size = 0x4000, scoped, tag = 'input window, operand 4, single buffered']
    #allocation11 [shape = 'u8[32768]{0}', space=vmem, size = 0x8000, scoped, tag = 'output window, operand 0']
    %10 = vsyncpa [#allocation3], 0
    %s11 = scalar_lea.sflag [#allocation3], 1
    %12 = vsyncpa %s11, 0
    %13 = vsyncpa [#allocation6], 0
    %14 = vsyncpa [#allocation9], 0
    %15 = vsyncpa [#allocation4], 0
    %s16 = scalar_lea.sflag [#allocation4], 1
    %17 = vsyncpa %s16, 0
    loop: start=0, step=1, limit=4
    $region2: #{tpu_custom_call.1} parent=1 // loop_pre_header
      _
    $region3: #{tpu_custom_call.1} parent=1 // loop_header
      %s19 = sphi 0, %s23
      %p20 = scmp.ge.s32.totalorder %s19, 4
      %s29 = sphi 0, %s31
      %s32 = sphi 0, %s29
      %s33 = sphi 0, %s32
      %s49 = sphi 0, %s33
      %s53 = sphi 0, %s53
      %s55 = sphi 0, %s53
      %s56 = sphi 0, %s55
      %s70 = sphi 0, %s56
      %s74 = sphi 0, %s74
      %s76 = sphi 0, %s74
      %s77 = sphi 0, %s76
      %s91 = sphi 0, %s77
      %s95 = sphi 0, %s95
      %s97 = sphi 0, %s95
      %s98 = sphi 0, %s97
      %s112 = sphi 0, %s98
      %s116 = sphi 0, %s116
      %s118 = sphi 0, %s116
      %s119 = sphi 0, %s118
      %s133 = sphi 0, %s119
      %s139 = sphi 0, %s141
      %s142 = sphi 0, %s139
      %s143 = sphi 0, %s142
      %s159 = sphi 0, %s143
    $region4: #{tpu_custom_call.1} parent=1 // loop_header_branch
      %22 = sbr.rel (%p20) target = $region8
    $region5: #{tpu_custom_call.1} parent=1 // loop_body
      %s24 = ssub.s32 %s19, 1
      %s25 = ssub.s32 %s19, 2
      %s26 = sadd.s32 %s19, 1
      %s27 = ssub.s32 %s19, %s26
      %p28 = scmp.eq.s32.totalorder %s27, 0
      %s30 = sadd.s32 %s29, 1
      %s31 = scalar_select %p28, %s29, %s30
      %p34 = pneg %p28
      %p35 = scmp.eq.s32.totalorder %s19, 1
      %p36 = por %p34, %p35
      %p37 = scmp.ne.s32.totalorder %s29, %s32
      %p38 = scmp.eq.s32.totalorder %s19, 0
      %p39 = por %p37, %p38
      %p40 = scmp.ne.s32.totalorder %s29, %s32
      %p41 = scmp.eq.s32.totalorder %s24, 1
      %p42 = por %p40, %p41
      %p43 = scmp.ne.s32.totalorder %s32, %s33
      %p44 = scmp.eq.s32.totalorder %s24, 0
      %p45 = por %p43, %p44
      %p46 = scmp.ne.s32.totalorder %s32, %s33
      %p47 = scmp.eq.s32.totalorder %s25, 1
      %p48 = por %p46, %p47
      %p50 = scmp.ne.s32.totalorder %s33, %s49
      %p51 = scmp.eq.s32.totalorder %s25, 0
      %p52 = por %p50, %p51
      %s54 = sadd.s32 %s53, 1
      %p57 = scmp.eq.s32.totalorder %s19, 1
      %p58 = scmp.ne.s32.totalorder %s53, %s55
      %p59 = scmp.eq.s32.totalorder %s19, 0
      %p60 = por %p58, %p59
      %p61 = scmp.ne.s32.totalorder %s53, %s55
      %p62 = scmp.eq.s32.totalorder %s24, 1
      %p63 = por %p61, %p62
      %p64 = scmp.ne.s32.totalorder %s55, %s56
      %p65 = scmp.eq.s32.totalorder %s24, 0
      %p66 = por %p64, %p65
      %p67 = scmp.ne.s32.totalorder %s55, %s56
      %p68 = scmp.eq.s32.totalorder %s25, 1
      %p69 = por %p67, %p68
      %p71 = scmp.ne.s32.totalorder %s56, %s70
      %p72 = scmp.eq.s32.totalorder %s25, 0
      %p73 = por %p71, %p72
      %s75 = sadd.s32 %s74, 1
      %p78 = scmp.eq.s32.totalorder %s19, 1
      %p79 = scmp.ne.s32.totalorder %s74, %s76
      %p80 = scmp.eq.s32.totalorder %s19, 0
      %p81 = por %p79, %p80
      %p82 = scmp.ne.s32.totalorder %s74, %s76
      %p83 = scmp.eq.s32.totalorder %s24, 1
      %p84 = por %p82, %p83
      %p85 = scmp.ne.s32.totalorder %s76, %s77
      %p86 = scmp.eq.s32.totalorder %s24, 0
      %p87 = por %p85, %p86
      %p88 = scmp.ne.s32.totalorder %s76, %s77
      %p89 = scmp.eq.s32.totalorder %s25, 1
      %p90 = por %p88, %p89
      %p92 = scmp.ne.s32.totalorder %s77, %s91
      %p93 = scmp.eq.s32.totalorder %s25, 0
      %p94 = por %p92, %p93
      %s96 = sadd.s32 %s95, 1
      %p99 = scmp.eq.s32.totalorder %s19, 1
      %p100 = scmp.ne.s32.totalorder %s95, %s97
      %p101 = scmp.eq.s32.totalorder %s19, 0
      %p102 = por %p100, %p101
      %p103 = scmp.ne.s32.totalorder %s95, %s97
      %p104 = scmp.eq.s32.totalorder %s24, 1
      %p105 = por %p103, %p104
      %p106 = scmp.ne.s32.totalorder %s97, %s98
      %p107 = scmp.eq.s32.totalorder %s24, 0
      %p108 = por %p106, %p107
      %p109 = scmp.ne.s32.totalorder %s97, %s98
      %p110 = scmp.eq.s32.totalorder %s25, 1
      %p111 = por %p109, %p110
      %p113 = scmp.ne.s32.totalorder %s98, %s112
      %p114 = scmp.eq.s32.totalorder %s25, 0
      %p115 = por %p113, %p114
      %s117 = sadd.s32 %s116, 1
      %p120 = scmp.eq.s32.totalorder %s19, 1
      %p121 = scmp.ne.s32.totalorder %s116, %s118
      %p122 = scmp.eq.s32.totalorder %s19, 0
      %p123 = por %p121, %p122
      %p124 = scmp.ne.s32.totalorder %s116, %s118
      %p125 = scmp.eq.s32.totalorder %s24, 1
      %p126 = por %p124, %p125
      %p127 = scmp.ne.s32.totalorder %s118, %s119
      %p128 = scmp.eq.s32.totalorder %s24, 0
      %p129 = por %p127, %p128
      %p130 = scmp.ne.s32.totalorder %s118, %s119
      %p131 = scmp.eq.s32.totalorder %s25, 1
      %p132 = por %p130, %p131
      %p134 = scmp.ne.s32.totalorder %s119, %s133
      %p135 = scmp.eq.s32.totalorder %s25, 0
      %p136 = por %p134, %p135
      %s137 = ssub.s32 %s19, %s26
      %p138 = scmp.eq.s32.totalorder %s137, 0
      %s140 = sadd.s32 %s139, 1
      %s141 = scalar_select %p138, %s139, %s140
      %p144 = pneg %p138
      %p145 = scmp.eq.s32.totalorder %s19, 1
      %p146 = por %p144, %p145
      %p147 = scmp.ne.s32.totalorder %s139, %s142
      %p148 = scmp.eq.s32.totalorder %s19, 0
      %p149 = por %p147, %p148
      %p150 = scmp.ne.s32.totalorder %s139, %s142
      %p151 = scmp.eq.s32.totalorder %s24, 1
      %p152 = por %p150, %p151
      %p153 = scmp.ne.s32.totalorder %s142, %s143
      %p154 = scmp.eq.s32.totalorder %s24, 0
      %p155 = por %p153, %p154
      %p156 = scmp.ne.s32.totalorder %s142, %s143
      %p157 = scmp.eq.s32.totalorder %s25, 1
      %p158 = por %p156, %p157
      %p160 = scmp.ne.s32.totalorder %s143, %s159
      %p161 = scmp.eq.s32.totalorder %s25, 0
      %p162 = por %p160, %p161
      %p163 = scmp.le.s32.totalorder 1, %s19
      %p164 = scmp.lt.s32.totalorder %s19, 3
      %p165 = pnand %p163, %p164
      %p166 = pneg %p165
      // Predicated region
      $region9: #{tpu_custom_call.1} parent=5 // pred_check
        _
      $region10: #{tpu_custom_call.1} parent=5 // pred_check_branch
        %168 = sbr.rel (%p165) target = $region12
      $region11: #{tpu_custom_call.1} parent=5 // pred_region
        %s169 = ssub.s32 %s19, 1
        // Predicated region
        $region13: #{tpu_custom_call.1} parent=11 // pred_check
          %p170 = pneg %p66
        $region14: #{tpu_custom_call.1} parent=11 // pred_check_branch
          %172 = sbr.rel (%p170) target = $region16
        $region15: #{tpu_custom_call.1} parent=11 // pred_region
          %s174 = ssub.s32 2048, 2048
          %175 = vsyncadd [#allocation6], %s174
          %s176 = sshll.u32 [#allocation5], 4
          %s177 = int_to_ptr.vmem [resolvable:$true] %s176
          %182 = dma.hbm_to_vmem [thread:$0]  %s1, 2048, %s177, [#allocation6], 128, 128, 8
        $region16: #{tpu_custom_call.1} parent=11 // pred_fallthru
          _
        // Predicated region
        $region17: #{tpu_custom_call.1} parent=11 // pred_check
          %p183 = pneg %p87
        $region18: #{tpu_custom_call.1} parent=11 // pred_check_branch
          %185 = sbr.rel (%p183) target = $region20
        $region19: #{tpu_custom_call.1} parent=11 // pred_region
          %s187 = ssub.s32 8192, 8192
          %188 = vsyncadd [#allocation6], %s187
          %s189 = sshll.u32 [#allocation7], 4
          %s190 = int_to_ptr.vmem [resolvable:$true] %s189
          %195 = dma.hbm_to_vmem [thread:$0]  %s2, 8192, %s190, [#allocation6], 128, 128, 8
        $region20: #{tpu_custom_call.1} parent=11 // pred_fallthru
          _
        // Predicated region
        $region21: #{tpu_custom_call.1} parent=11 // pred_check
          %p196 = pneg %p108
        $region22: #{tpu_custom_call.1} parent=11 // pred_check_branch
          %198 = sbr.rel (%p196) target = $region24
        $region23: #{tpu_custom_call.1} parent=11 // pred_region
          %s200 = ssub.s32 4096, 4096
          %201 = vsyncadd [#allocation9], %s200
          %s202 = sshll.u32 [#allocation8], 4
          %s203 = int_to_ptr.vmem [resolvable:$true] %s202
          %208 = dma.hbm_to_vmem [thread:$0]  %s3, 4096, %s203, [#allocation9], 128, 128, 8
        $region24: #{tpu_custom_call.1} parent=11 // pred_fallthru
          _
        // Predicated region
        $region25: #{tpu_custom_call.1} parent=11 // pred_check
          %p209 = pneg %p129
        $region26: #{tpu_custom_call.1} parent=11 // pred_check_branch
          %211 = sbr.rel (%p209) target = $region28
        $region27: #{tpu_custom_call.1} parent=11 // pred_region
          %s213 = ssub.s32 512, 512
          %214 = vsyncadd [#allocation9], %s213
          %s215 = sshll.u32 [#allocation10], 4
          %s216 = int_to_ptr.vmem [resolvable:$true] %s215
          %221 = dma.hbm_to_vmem [thread:$0]  %s4, 512, %s216, [#allocation9], 256, 256, 16
        $region28: #{tpu_custom_call.1} parent=11 // pred_fallthru
          _
      $region12: #{tpu_custom_call.1} parent=5 // pred_fallthru
        _
      %p222 = scmp.lt.s32.totalorder %s19, 2
      // Predicated region
      $region29: #{tpu_custom_call.1} parent=5 // pred_check
        %p223 = pneg %p222
      $region30: #{tpu_custom_call.1} parent=5 // pred_check_branch
        %225 = sbr.rel (%p223) target = $region32
      $region31: #{tpu_custom_call.1} parent=5 // pred_region
        // Predicated region
        $region33: #{tpu_custom_call.1} parent=31 // pred_check
          %p226 = pneg %p39
        $region34: #{tpu_custom_call.1} parent=31 // pred_check_branch
          %228 = sbr.rel (%p226) target = $region36
        $region35: #{tpu_custom_call.1} parent=31 // pred_region
          %s229 = sand.u32 %s29, 1
          %s230 = scalar_lea.sflag [#allocation3], %s229
          %s231 = sand.u32 %s29, 1
          %s232 = smul.addr %s231, 32
          %s233 = scalar_lea.vmem [#allocation2], %s232
          %s234 = smul.u32 4, %s19
          %s236 = ssub.s32 512, 512
          %237 = vsyncadd %s230, %s236
          %s238 = smul.addr %s234, 128
          %s239 = scalar_lea.hbm %s0, %s238
          %s240 = sshll.u32 %s233, 4
          %s241 = int_to_ptr.vmem [resolvable:$true] %s240
          %246 = dma.hbm_to_vmem [thread:$0]  %s239, 512, %s241, %s230, 128, 128, 8
        $region36: #{tpu_custom_call.1} parent=31 // pred_fallthru
          _
      $region32: #{tpu_custom_call.1} parent=5 // pred_fallthru
        _
      %p247 = scmp.le.s32.totalorder 1, %s19
      %p248 = scmp.lt.s32.totalorder %s19, 3
      %p249 = pnand %p247, %p248
      %p250 = pneg %p249
      // Predicated region
      $region37: #{tpu_custom_call.1} parent=5 // pred_check
        _
      $region38: #{tpu_custom_call.1} parent=5 // pred_check_branch
        %252 = sbr.rel (%p249) target = $region40
      $region39: #{tpu_custom_call.1} parent=5 // pred_region
        %s253 = ssub.s32 %s19, 1
        %s254 = sand.u32 %s32, 1
        %s255 = scalar_lea.sflag [#allocation3], %s254
        %s256 = sand.u32 %s32, 1
        %s257 = smul.addr %s256, 32
        %s258 = scalar_lea.vmem [#allocation2], %s257
        // Predicated region
        $region41: #{tpu_custom_call.1} parent=39 // pred_check
          %p259 = pneg %p45
        $region42: #{tpu_custom_call.1} parent=39 // pred_check_branch
          %261 = sbr.rel (%p259) target = $region44
        $region43: #{tpu_custom_call.1} parent=39 // pred_region
          %262 = dma.done %s255, 512
        $region44: #{tpu_custom_call.1} parent=39 // pred_fallthru
          _
        // Predicated region
        $region45: #{tpu_custom_call.1} parent=39 // pred_check
          %p263 = pneg %p66
        $region46: #{tpu_custom_call.1} parent=39 // pred_check_branch
          %265 = sbr.rel (%p263) target = $region48
        $region47: #{tpu_custom_call.1} parent=39 // pred_region
          %266 = dma.done [#allocation6], 2048
        $region48: #{tpu_custom_call.1} parent=39 // pred_fallthru
          _
        // Predicated region
        $region49: #{tpu_custom_call.1} parent=39 // pred_check
          %p267 = pneg %p87
        $region50: #{tpu_custom_call.1} parent=39 // pred_check_branch
          %269 = sbr.rel (%p267) target = $region52
        $region51: #{tpu_custom_call.1} parent=39 // pred_region
          %270 = dma.done [#allocation6], 8192
        $region52: #{tpu_custom_call.1} parent=39 // pred_fallthru
          _
        // Predicated region
        $region53: #{tpu_custom_call.1} parent=39 // pred_check
          %p271 = pneg %p108
        $region54: #{tpu_custom_call.1} parent=39 // pred_check_branch
          %273 = sbr.rel (%p271) target = $region56
        $region55: #{tpu_custom_call.1} parent=39 // pred_region
          %274 = dma.done [#allocation9], 4096
        $region56: #{tpu_custom_call.1} parent=39 // pred_fallthru
          _
        // Predicated region
        $region57: #{tpu_custom_call.1} parent=39 // pred_check
          %p275 = pneg %p129
        $region58: #{tpu_custom_call.1} parent=39 // pred_check_branch
          %277 = sbr.rel (%p275) target = $region60
        $region59: #{tpu_custom_call.1} parent=39 // pred_region
          %278 = dma.done [#allocation9], 512
        $region60: #{tpu_custom_call.1} parent=39 // pred_fallthru
          _
        %s279 = sand.u32 %s32, 1
        %s280 = scalar_lea.sflag [#allocation3], %s279
        %s281 = sand.u32 %s32, 1
        %s282 = smul.addr %s281, 32
        %s283 = scalar_lea.vmem [#allocation2], %s282
        %p284 = pneg %p45
        %p285 = pneg %p42
        %p286 = pneg %p66
        %p287 = pneg %p63
        %p288 = pneg %p87
        %p289 = pneg %p84
        %p290 = pneg %p108
        %p291 = pneg %p105
        %p292 = pneg %p129
        %p293 = pneg %p126
        %p294 = pneg %p155
        %p295 = pneg %p152
        %s296 = sand.u32 %s142, 1
        %s297 = scalar_lea.sflag [#allocation4], %s296
        %s298 = sand.u32 %s142, 1
        %s299 = smul.addr %s298, 32
        %s300 = scalar_lea.vmem [#allocation11], %s299
        %s301 = smul.u32 4, %s24
        %s302 = smul.u32 4, %s24
        %v304 = vld [vmem:[%s258] sm:$0xff]
        %v305 = vld [vmem:[%s258 + $0x8] sm:$0xff]
        %v306 = vld [vmem:[%s258 + $0x10] sm:$0xff]
        %v307 = vld [vmem:[%s258 + $0x18] sm:$0xff]
        %v308 = vld [vmem:[#allocation5] sm:$0xff]
        %v309 = vld [vmem:[#allocation5 + $0x8] sm:$0xff]
        %v310 = vld [vmem:[#allocation5 + $0x10] sm:$0xff]
        %v311 = vld [vmem:[#allocation5 + $0x18] sm:$0xff]
        %v312 = vld [vmem:[#allocation5 + $0x20] sm:$0xff]
        %v313 = vld [vmem:[#allocation5 + $0x28] sm:$0xff]
        %v314 = vld [vmem:[#allocation5 + $0x30] sm:$0xff]
        %v315 = vld [vmem:[#allocation5 + $0x38] sm:$0xff]
        %v316 = vld [vmem:[#allocation5 + $0x40] sm:$0xff]
        %v317 = vld [vmem:[#allocation5 + $0x48] sm:$0xff]
        %v318 = vld [vmem:[#allocation5 + $0x50] sm:$0xff]
        %v319 = vld [vmem:[#allocation5 + $0x58] sm:$0xff]
        %v320 = vld [vmem:[#allocation5 + $0x60] sm:$0xff]
        %v321 = vld [vmem:[#allocation5 + $0x68] sm:$0xff]
        %v322 = vld [vmem:[#allocation5 + $0x70] sm:$0xff]
        %v323 = vld [vmem:[#allocation5 + $0x78] sm:$0xff]
        %v324 = vld [vmem:[#allocation7] sm:$0xff]
        %v325 = vld [vmem:[#allocation7 + $0x8] sm:$0xff]
        %v326 = vld [vmem:[#allocation7 + $0x10] sm:$0xff]
        %v327 = vld [vmem:[#allocation7 + $0x18] sm:$0xff]
        %v328 = vld [vmem:[#allocation7 + $0x20] sm:$0xff]
        %v329 = vld [vmem:[#allocation7 + $0x28] sm:$0xff]
        %v330 = vld [vmem:[#allocation7 + $0x30] sm:$0xff]
        %v331 = vld [vmem:[#allocation7 + $0x38] sm:$0xff]
        %v332 = vld [vmem:[#allocation7 + $0x40] sm:$0xff]
        %v333 = vld [vmem:[#allocation7 + $0x48] sm:$0xff]
        %v334 = vld [vmem:[#allocation7 + $0x50] sm:$0xff]
        %v335 = vld [vmem:[#allocation7 + $0x58] sm:$0xff]
        %v336 = vld [vmem:[#allocation7 + $0x60] sm:$0xff]
        %v337 = vld [vmem:[#allocation7 + $0x68] sm:$0xff]
        %v338 = vld [vmem:[#allocation7 + $0x70] sm:$0xff]
        %v339 = vld [vmem:[#allocation7 + $0x78] sm:$0xff]
        %v340 = vld [vmem:[#allocation7 + $0x80] sm:$0xff]
        %v341 = vld [vmem:[#allocation7 + $0x88] sm:$0xff]
        %v342 = vld [vmem:[#allocation7 + $0x90] sm:$0xff]
        %v343 = vld [vmem:[#allocation7 + $0x98] sm:$0xff]
        %v344 = vld [vmem:[#allocation7 + $0xa0] sm:$0xff]
        %v345 = vld [vmem:[#allocation7 + $0xa8] sm:$0xff]
        %v346 = vld [vmem:[#allocation7 + $0xb0] sm:$0xff]
        %v347 = vld [vmem:[#allocation7 + $0xb8] sm:$0xff]
        %v348 = vld [vmem:[#allocation7 + $0xc0] sm:$0xff]
        %v349 = vld [vmem:[#allocation7 + $0xc8] sm:$0xff]
        %v350 = vld [vmem:[#allocation7 + $0xd0] sm:$0xff]
        %v351 = vld [vmem:[#allocation7 + $0xd8] sm:$0xff]
        %v352 = vld [vmem:[#allocation7 + $0xe0] sm:$0xff]
        %v353 = vld [vmem:[#allocation7 + $0xe8] sm:$0xff]
        %v354 = vld [vmem:[#allocation7 + $0xf0] sm:$0xff]
        %v355 = vld [vmem:[#allocation7 + $0xf8] sm:$0xff]
        %s356 = scalar_lea.vmem [#allocation7], 256
        %v357 = vld [vmem:[%s356] sm:$0xff]
        %v358 = vld [vmem:[%s356 + $0x8] sm:$0xff]
        %v359 = vld [vmem:[%s356 + $0x10] sm:$0xff]
        %v360 = vld [vmem:[%s356 + $0x18] sm:$0xff]
        %v361 = vld [vmem:[%s356 + $0x20] sm:$0xff]
        %v362 = vld [vmem:[%s356 + $0x28] sm:$0xff]
        %v363 = vld [vmem:[%s356 + $0x30] sm:$0xff]
        %v364 = vld [vmem:[%s356 + $0x38] sm:$0xff]
        %v365 = vld [vmem:[%s356 + $0x40] sm:$0xff]
        %v366 = vld [vmem:[%s356 + $0x48] sm:$0xff]
        %v367 = vld [vmem:[%s356 + $0x50] sm:$0xff]
        %v368 = vld [vmem:[%s356 + $0x58] sm:$0xff]
        %v369 = vld [vmem:[%s356 + $0x60] sm:$0xff]
        %v370 = vld [vmem:[%s356 + $0x68] sm:$0xff]
        %v371 = vld [vmem:[%s356 + $0x70] sm:$0xff]
        %v372 = vld [vmem:[%s356 + $0x78] sm:$0xff]
        %v373 = vld [vmem:[%s356 + $0x80] sm:$0xff]
        %v374 = vld [vmem:[%s356 + $0x88] sm:$0xff]
        %v375 = vld [vmem:[%s356 + $0x90] sm:$0xff]
        %v376 = vld [vmem:[%s356 + $0x98] sm:$0xff]
        %v377 = vld [vmem:[%s356 + $0xa0] sm:$0xff]
        %v378 = vld [vmem:[%s356 + $0xa8] sm:$0xff]
        %v379 = vld [vmem:[%s356 + $0xb0] sm:$0xff]
        %v380 = vld [vmem:[%s356 + $0xb8] sm:$0xff]
        %v381 = vld [vmem:[%s356 + $0xc0] sm:$0xff]
        %v382 = vld [vmem:[%s356 + $0xc8] sm:$0xff]
        %v383 = vld [vmem:[%s356 + $0xd0] sm:$0xff]
        %v384 = vld [vmem:[%s356 + $0xd8] sm:$0xff]
        %v385 = vld [vmem:[%s356 + $0xe0] sm:$0xff]
        %v386 = vld [vmem:[%s356 + $0xe8] sm:$0xff]
        %v387 = vld [vmem:[%s356 + $0xf0] sm:$0xff]
        %v388 = vld [vmem:[%s356 + $0xf8] sm:$0xff]
        %v389 = vld [vmem:[#allocation8] sm:$0xff]
        %v390 = vld [vmem:[#allocation8 + $0x8] sm:$0xff]
        %v391 = vld [vmem:[#allocation8 + $0x10] sm:$0xff]
        %v392 = vld [vmem:[#allocation8 + $0x18] sm:$0xff]
        %v393 = vld [vmem:[#allocation8 + $0x20] sm:$0xff]
        %v394 = vld [vmem:[#allocation8 + $0x28] sm:$0xff]
        %v395 = vld [vmem:[#allocation8 + $0x30] sm:$0xff]
        %v396 = vld [vmem:[#allocation8 + $0x38] sm:$0xff]
        %v397 = vld [vmem:[#allocation8 + $0x40] sm:$0xff]
        %v398 = vld [vmem:[#allocation8 + $0x48] sm:$0xff]
        %v399 = vld [vmem:[#allocation8 + $0x50] sm:$0xff]
        %v400 = vld [vmem:[#allocation8 + $0x58] sm:$0xff]
        %v401 = vld [vmem:[#allocation8 + $0x60] sm:$0xff]
        %v402 = vld [vmem:[#allocation8 + $0x68] sm:$0xff]
        %v403 = vld [vmem:[#allocation8 + $0x70] sm:$0xff]
        %v404 = vld [vmem:[#allocation8 + $0x78] sm:$0xff]
        %v405 = vld [vmem:[#allocation8 + $0x80] sm:$0xff]
        %v406 = vld [vmem:[#allocation8 + $0x88] sm:$0xff]
        %v407 = vld [vmem:[#allocation8 + $0x90] sm:$0xff]
        %v408 = vld [vmem:[#allocation8 + $0x98] sm:$0xff]
        %v409 = vld [vmem:[#allocation8 + $0xa0] sm:$0xff]
        %v410 = vld [vmem:[#allocation8 + $0xa8] sm:$0xff]
        %v411 = vld [vmem:[#allocation8 + $0xb0] sm:$0xff]
        %v412 = vld [vmem:[#allocation8 + $0xb8] sm:$0xff]
        %v413 = vld [vmem:[#allocation8 + $0xc0] sm:$0xff]
        %v414 = vld [vmem:[#allocation8 + $0xc8] sm:$0xff]
        %v415 = vld [vmem:[#allocation8 + $0xd0] sm:$0xff]
        %v416 = vld [vmem:[#allocation8 + $0xd8] sm:$0xff]
        %v417 = vld [vmem:[#allocation8 + $0xe0] sm:$0xff]
        %v418 = vld [vmem:[#allocation8 + $0xe8] sm:$0xff]
        %v419 = vld [vmem:[#allocation8 + $0xf0] sm:$0xff]
        %v420 = vld [vmem:[#allocation8 + $0xf8] sm:$0xff]
        %v421 = vld [vmem:[#allocation10] sm:$0xff]
        %v422 = vld [vmem:[#allocation10 + $0x8] sm:$0xff]
        %v423 = vld [vmem:[#allocation10 + $0x10] sm:$0xff]
        %v424 = vld [vmem:[#allocation10 + $0x18] sm:$0xff]
        %v425 = vpack.c.bf16 %v305, %v304
        %v426 = vpack.c.bf16 %v307, %v306
        %v427 = vlaneseq
        %v428 = vshrl.u32 %v427, 7
        %v429 = vsub.s32 0, %v428
        %v430 = vrot.slane %v421, %v429
        %v431 = vlaneseq
        %v432 = vshrl.u32 %v431, 7
        %v433 = vsub.s32 0, %v432
        %v434 = vrot.slane %v422, %v433
        %v451 = vunpack.c.l.b16 %v308
        %v452 = vunpack.c.h.b16 %v308
        %v453 = vunpack.c.l.b16 %v309
        %v454 = vunpack.c.h.b16 %v309
        %v455 = vunpack.c.l.b16 %v310
        %v456 = vunpack.c.h.b16 %v310
        %v457 = vunpack.c.l.b16 %v311
        %v458 = vunpack.c.h.b16 %v311
        %v459 = vunpack.c.l.b16 %v312
        %v460 = vunpack.c.h.b16 %v312
        %v461 = vunpack.c.l.b16 %v313
        %v462 = vunpack.c.h.b16 %v313
        %v463 = vunpack.c.l.b16 %v314
        %v464 = vunpack.c.h.b16 %v314
        %v465 = vunpack.c.l.b16 %v315
        %v466 = vunpack.c.h.b16 %v315
        %v467 = vunpack.c.l.b16 %v316
        %v468 = vunpack.c.h.b16 %v316
        %v469 = vunpack.c.l.b16 %v317
        %v470 = vunpack.c.h.b16 %v317
        %v471 = vunpack.c.l.b16 %v318
        %v472 = vunpack.c.h.b16 %v318
        %v473 = vunpack.c.l.b16 %v319
        %v474 = vunpack.c.h.b16 %v319
        %v475 = vunpack.c.l.b16 %v320
        %v476 = vunpack.c.h.b16 %v320
        %v477 = vunpack.c.l.b16 %v321
        %v478 = vunpack.c.h.b16 %v321
        %v479 = vunpack.c.l.b16 %v322
        %v480 = vunpack.c.h.b16 %v322
        %v481 = vunpack.c.l.b16 %v323
        %v482 = vunpack.c.h.b16 %v323
        %v483 = vpack.c.b16 %v453, %v451
        %v484 = vpack.c.b16 %v454, %v452
        %v485 = vpack.c.b16 %v457, %v455
        %v486 = vpack.c.b16 %v458, %v456
        %v487 = vpack.c.b16 %v461, %v459
        %v488 = vpack.c.b16 %v462, %v460
        %v489 = vpack.c.b16 %v465, %v463
        %v490 = vpack.c.b16 %v466, %v464
        %v491 = vpack.c.b16 %v469, %v467
        %v492 = vpack.c.b16 %v470, %v468
        %v493 = vpack.c.b16 %v473, %v471
        %v494 = vpack.c.b16 %v474, %v472
        %v495 = vpack.c.b16 %v477, %v475
        %v496 = vpack.c.b16 %v478, %v476
        %v497 = vpack.c.b16 %v481, %v479
        %v498 = vpack.c.b16 %v482, %v480
        %515 = vmatprep.subr.bf16.mxu0 %v498
        %516 = vmatpush1.bf16.msra.mxu0 %v497
        %517 = vmatprep.subr.bf16.mxu0 %v496
        %518 = vmatpush1.bf16.msra.mxu0 %v495
        %519 = vmatprep.subr.bf16.mxu0 %v494
        %520 = vmatpush1.bf16.msra.mxu0 %v493
        %521 = vmatprep.subr.bf16.mxu0 %v492
        %522 = vmatpush1.bf16.msra.mxu0 %v491
        %523 = vmatprep.subr.bf16.mxu0 %v490
        %524 = vmatpush1.bf16.msra.mxu0 %v489
        %525 = vmatprep.subr.bf16.mxu0 %v488
        %526 = vmatpush1.bf16.msra.mxu0 %v487
        %527 = vmatprep.subr.bf16.mxu0 %v486
        %528 = vmatpush1.bf16.msra.mxu0 %v485
        %529 = vmatprep.subr.bf16.mxu0 %v484
        %530 = vmatpush1.bf16.msra.mxu0 %v483
        %531 = vmatprep.subr.bf16.mxu0 0
        %532 = vmatpush2.bf16.msra.mxu0 0
        %533 = vmatprep.subr.bf16.mxu0 0
        %534 = vmatpush2.bf16.msra.mxu0 0
        %535 = vmatprep.subr.bf16.mxu0 0
        %536 = vmatpush2.bf16.msra.mxu0 0
        %537 = vmatprep.subr.bf16.mxu0 0
        %538 = vmatpush2.bf16.msra.mxu0 0
        %539 = vmatprep.subr.bf16.mxu0 0
        %540 = vmatpush2.bf16.msra.mxu0 0
        %541 = vmatprep.subr.bf16.mxu0 0
        %542 = vmatpush2.bf16.msra.mxu0 0
        %543 = vmatprep.subr.bf16.mxu0 0
        %544 = vmatpush2.bf16.msra.mxu0 0
        %545 = vmatprep.subr.bf16.mxu0 0
        %546 = vmatpush2.bf16.msra.mxu0 0
        %547 = vmatprep.mubr.bf16.mxu0 0
        %548 = vmatmul.mubr.bf16.gmra.mxu0 %v425
        %v549 = vpop.f32.mrf.mxu0
        %v550 = vadd.f32 %v430, %v549
        %v551 = vpop.f32.mrf.mxu0
        %v552 = vadd.f32 %v434, %v551
        %v553 = vpop.f32.mrf.mxu0
        %v554 = vadd.f32 %v430, %v553
        %v555 = vpop.f32.mrf.mxu0
        %v556 = vadd.f32 %v434, %v555
        %557 = vmatprep.mubr.bf16.mxu0 0
        %558 = vmatmul.mubr.bf16.gmra.mxu0 %v426
        %v559 = vpop.f32.mrf.mxu0
        %v560 = vadd.f32 %v430, %v559
        %v561 = vpop.f32.mrf.mxu0
        %v562 = vadd.f32 %v434, %v561
        %v563 = vpop.f32.mrf.mxu0
        %v564 = vadd.f32 %v430, %v563
        %v565 = vpop.f32.mrf.mxu0
        %v566 = vadd.f32 %v434, %v565
        %567 = vdwg.mxu0
        %568 = vadd.xlane.f32.xlu0 %v550
        %v569 = vpop.xlane.xlu0 %568
        %570 = vadd.xlane.f32.xlu0 %v554
        %v571 = vpop.xlane.xlu0 %570
        %572 = vadd.xlane.f32.xlu0 %v560
        %v573 = vpop.xlane.xlu0 %572
        %574 = vadd.xlane.f32.xlu0 %v564
        %v575 = vpop.xlane.xlu0 %574
        %v576 = vrcp.pop 128.0
        %v577 = vmul.f32 %v569, %v576
        %v578 = vmul.f32 %v571, %v576
        %v579 = vmul.f32 %v573, %v576
        %v580 = vmul.f32 %v575, %v576
        %v581 = vmul.f32 %v550, %v550
        %v582 = vmul.f32 %v554, %v554
        %v583 = vmul.f32 %v560, %v560
        %v584 = vmul.f32 %v564, %v564
        %585 = vadd.xlane.f32.xlu0 %v581
        %v586 = vpop.xlane.xlu0 %585
        %587 = vadd.xlane.f32.xlu0 %v582
        %v588 = vpop.xlane.xlu0 %587
        %589 = vadd.xlane.f32.xlu0 %v583
        %v590 = vpop.xlane.xlu0 %589
        %591 = vadd.xlane.f32.xlu0 %v584
        %v592 = vpop.xlane.xlu0 %591
        %v593 = vmul.f32 %v586, %v576
        %v594 = vmul.f32 %v588, %v576
        %v595 = vmul.f32 %v590, %v576
        %v596 = vmul.f32 %v592, %v576
        %v597 = vmul.f32 %v577, %v577
        %v598 = vmul.f32 %v578, %v578
        %v599 = vmul.f32 %v579, %v579
        %v600 = vmul.f32 %v580, %v580
        %v601 = vsub.f32 %v593, %v597
        %v602 = vsub.f32 %v594, %v598
        %v603 = vsub.f32 %v595, %v599
        %v604 = vsub.f32 %v596, %v600
        %v605 = vmax.f32 %v601, 0.0
        %v606 = vmax.f32 %v602, 0.0
        %v607 = vmax.f32 %v603, 0.0
        %v608 = vmax.f32 %v604, 0.0
        %v609 = vadd.f32 %v605, 1e-05
        %v610 = vadd.f32 %v606, 1e-05
        %v611 = vadd.f32 %v607, 1e-05
        %v612 = vadd.f32 %v608, 1e-05
        %v613 = vrsqrt.pop %v609
        %v614 = vrsqrt.pop %v610
        %v615 = vrsqrt.pop %v611
        %v616 = vrsqrt.pop %v612
        %v617 = vsub.f32 %v550, %v577
        %v618 = vsub.f32 %v554, %v578
        %v619 = vsub.f32 %v560, %v579
        %v620 = vsub.f32 %v564, %v580
        %v621 = vmul.f32 %v617, %v613
        %v622 = vmul.f32 %v618, %v614
        %v623 = vmul.f32 %v619, %v615
        %v624 = vmul.f32 %v620, %v616
        %v625 = vlaneseq
        %v626 = vshrl.u32 %v625, 7
        %v627 = vsub.s32 1, %v626
        %v628 = vrot.slane %v421, %v627
        %v629 = vmul.f32 %v621, %v628
        %v630 = vmul.f32 %v622, %v628
        %v631 = vmul.f32 %v623, %v628
        %v632 = vmul.f32 %v624, %v628
        %v633 = vlaneseq
        %v634 = vshrl.u32 %v633, 7
        %v635 = vsub.s32 2, %v634
        %v636 = vrot.slane %v421, %v635
        %v637 = vadd.f32 %v629, %v636
        %v638 = vadd.f32 %v630, %v636
        %v639 = vadd.f32 %v631, %v636
        %v640 = vadd.f32 %v632, %v636
        %v641 = vmax.f32 %v637, 0.0
        %v642 = vmax.f32 %v638, 0.0
        %v643 = vmax.f32 %v639, 0.0
        %v644 = vmax.f32 %v640, 0.0
        %645 = vadd.xlane.f32.xlu0 %v552
        %v646 = vpop.xlane.xlu0 %645
        %647 = vadd.xlane.f32.xlu0 %v556
        %v648 = vpop.xlane.xlu0 %647
        %649 = vadd.xlane.f32.xlu0 %v562
        %v650 = vpop.xlane.xlu0 %649
        %651 = vadd.xlane.f32.xlu0 %v566
        %v652 = vpop.xlane.xlu0 %651
        %v653 = vmul.f32 %v646, %v576
        %v654 = vmul.f32 %v648, %v576
        %v655 = vmul.f32 %v650, %v576
        %v656 = vmul.f32 %v652, %v576
        %v657 = vmul.f32 %v552, %v552
        %v658 = vmul.f32 %v556, %v556
        %v659 = vmul.f32 %v562, %v562
        %v660 = vmul.f32 %v566, %v566
        %661 = vadd.xlane.f32.xlu0 %v657
        %v662 = vpop.xlane.xlu0 %661
        %663 = vadd.xlane.f32.xlu0 %v658
        %v664 = vpop.xlane.xlu0 %663
        %665 = vadd.xlane.f32.xlu0 %v659
        %v666 = vpop.xlane.xlu0 %665
        %667 = vadd.xlane.f32.xlu0 %v660
        %v668 = vpop.xlane.xlu0 %667
        %v669 = vmul.f32 %v662, %v576
        %v670 = vmul.f32 %v664, %v576
        %v671 = vmul.f32 %v666, %v576
        %v672 = vmul.f32 %v668, %v576
        %v673 = vmul.f32 %v653, %v653
        %v674 = vmul.f32 %v654, %v654
        %v675 = vmul.f32 %v655, %v655
        %v676 = vmul.f32 %v656, %v656
        %v677 = vsub.f32 %v669, %v673
        %v678 = vsub.f32 %v670, %v674
        %v679 = vsub.f32 %v671, %v675
        %v680 = vsub.f32 %v672, %v676
        %v681 = vmax.f32 %v677, 0.0
        %v682 = vmax.f32 %v678, 0.0
        %v683 = vmax.f32 %v679, 0.0
        %v684 = vmax.f32 %v680, 0.0
        %v685 = vadd.f32 %v681, 1e-05
        %v686 = vadd.f32 %v682, 1e-05
        %v687 = vadd.f32 %v683, 1e-05
        %v688 = vadd.f32 %v684, 1e-05
        %v689 = vrsqrt.pop %v685
        %v690 = vrsqrt.pop %v686
        %v691 = vrsqrt.pop %v687
        %v692 = vrsqrt.pop %v688
        %v693 = vsub.f32 %v552, %v653
        %v694 = vsub.f32 %v556, %v654
        %v695 = vsub.f32 %v562, %v655
        %v696 = vsub.f32 %v566, %v656
        %v697 = vmul.f32 %v693, %v689
        %v698 = vmul.f32 %v694, %v690
        %v699 = vmul.f32 %v695, %v691
        %v700 = vmul.f32 %v696, %v692
        %v701 = vlaneseq
        %v702 = vshrl.u32 %v701, 7
        %v703 = vsub.s32 1, %v702
        %v704 = vrot.slane %v422, %v703
        %v705 = vmul.f32 %v697, %v704
        %v706 = vmul.f32 %v698, %v704
        %v707 = vmul.f32 %v699, %v704
        %v708 = vmul.f32 %v700, %v704
        %v709 = vlaneseq
        %v710 = vshrl.u32 %v709, 7
        %v711 = vsub.s32 2, %v710
        %v712 = vrot.slane %v422, %v711
        %v713 = vadd.f32 %v705, %v712
        %v714 = vadd.f32 %v706, %v712
        %v715 = vadd.f32 %v707, %v712
        %v716 = vadd.f32 %v708, %v712
        %v717 = vmax.f32 %v713, 0.0
        %v718 = vmax.f32 %v714, 0.0
        %v719 = vmax.f32 %v715, 0.0
        %v720 = vmax.f32 %v716, 0.0
        %v721 = vpack.c.bf16 %v642, %v641
        %v722 = vpack.c.bf16 %v718, %v717
        %v723 = vpack.c.bf16 %v644, %v643
        %v724 = vpack.c.bf16 %v720, %v719
        %v725 = vlaneseq
        %v726 = vshrl.u32 %v725, 7
        %v727 = vsub.s32 3, %v726
        %v728 = vrot.slane %v421, %v727
        %v729 = vlaneseq
        %v730 = vshrl.u32 %v729, 7
        %v731 = vsub.s32 3, %v730
        %v732 = vrot.slane %v422, %v731
        %v765 = vunpack.c.l.b16 %v324
        %v766 = vunpack.c.h.b16 %v324
        %v767 = vunpack.c.l.b16 %v325
        %v768 = vunpack.c.h.b16 %v325
        %v769 = vunpack.c.l.b16 %v326
        %v770 = vunpack.c.h.b16 %v326
        %v771 = vunpack.c.l.b16 %v327
        %v772 = vunpack.c.h.b16 %v327
        %v773 = vunpack.c.l.b16 %v328
        %v774 = vunpack.c.h.b16 %v328
        %v775 = vunpack.c.l.b16 %v329
        %v776 = vunpack.c.h.b16 %v329
        %v777 = vunpack.c.l.b16 %v330
        %v778 = vunpack.c.h.b16 %v330
        %v779 = vunpack.c.l.b16 %v331
        %v780 = vunpack.c.h.b16 %v331
        %v781 = vunpack.c.l.b16 %v332
        %v782 = vunpack.c.h.b16 %v332
        %v783 = vunpack.c.l.b16 %v333
        %v784 = vunpack.c.h.b16 %v333
        %v785 = vunpack.c.l.b16 %v334
        %v786 = vunpack.c.h.b16 %v334
        %v787 = vunpack.c.l.b16 %v335
        %v788 = vunpack.c.h.b16 %v335
        %v789 = vunpack.c.l.b16 %v336
        %v790 = vunpack.c.h.b16 %v336
        %v791 = vunpack.c.l.b16 %v337
        %v792 = vunpack.c.h.b16 %v337
        %v793 = vunpack.c.l.b16 %v338
        %v794 = vunpack.c.h.b16 %v338
        %v795 = vunpack.c.l.b16 %v339
        %v796 = vunpack.c.h.b16 %v339
        %v797 = vunpack.c.l.b16 %v340
        %v798 = vunpack.c.h.b16 %v340
        %v799 = vunpack.c.l.b16 %v341
        %v800 = vunpack.c.h.b16 %v341
        %v801 = vunpack.c.l.b16 %v342
        %v802 = vunpack.c.h.b16 %v342
        %v803 = vunpack.c.l.b16 %v343
        %v804 = vunpack.c.h.b16 %v343
        %v805 = vunpack.c.l.b16 %v344
        %v806 = vunpack.c.h.b16 %v344
        %v807 = vunpack.c.l.b16 %v345
        %v808 = vunpack.c.h.b16 %v345
        %v809 = vunpack.c.l.b16 %v346
        %v810 = vunpack.c.h.b16 %v346
        %v811 = vunpack.c.l.b16 %v347
        %v812 = vunpack.c.h.b16 %v347
        %v813 = vunpack.c.l.b16 %v348
        %v814 = vunpack.c.h.b16 %v348
        %v815 = vunpack.c.l.b16 %v349
        %v816 = vunpack.c.h.b16 %v349
        %v817 = vunpack.c.l.b16 %v350
        %v818 = vunpack.c.h.b16 %v350
        %v819 = vunpack.c.l.b16 %v351
        %v820 = vunpack.c.h.b16 %v351
        %v821 = vunpack.c.l.b16 %v352
        %v822 = vunpack.c.h.b16 %v352
        %v823 = vunpack.c.l.b16 %v353
        %v824 = vunpack.c.h.b16 %v353
        %v825 = vunpack.c.l.b16 %v354
        %v826 = vunpack.c.h.b16 %v354
        %v827 = vunpack.c.l.b16 %v355
        %v828 = vunpack.c.h.b16 %v355
        %v829 = vpack.c.b16 %v767, %v765
        %v830 = vpack.c.b16 %v768, %v766
        %v831 = vpack.c.b16 %v771, %v769
        %v832 = vpack.c.b16 %v772, %v770
        %v833 = vpack.c.b16 %v775, %v773
        %v834 = vpack.c.b16 %v776, %v774
        %v835 = vpack.c.b16 %v779, %v777
        %v836 = vpack.c.b16 %v780, %v778
        %v837 = vpack.c.b16 %v783, %v781
        %v838 = vpack.c.b16 %v784, %v782
        %v839 = vpack.c.b16 %v787, %v785
        %v840 = vpack.c.b16 %v788, %v786
        %v841 = vpack.c.b16 %v791, %v789
        %v842 = vpack.c.b16 %v792, %v790
        %v843 = vpack.c.b16 %v795, %v793
        %v844 = vpack.c.b16 %v796, %v794
        %v845 = vpack.c.b16 %v799, %v797
        %v846 = vpack.c.b16 %v800, %v798
        %v847 = vpack.c.b16 %v803, %v801
        %v848 = vpack.c.b16 %v804, %v802
        %v849 = vpack.c.b16 %v807, %v805
        %v850 = vpack.c.b16 %v808, %v806
        %v851 = vpack.c.b16 %v811, %v809
        %v852 = vpack.c.b16 %v812, %v810
        %v853 = vpack.c.b16 %v815, %v813
        %v854 = vpack.c.b16 %v816, %v814
        %v855 = vpack.c.b16 %v819, %v817
        %v856 = vpack.c.b16 %v820, %v818
        %v857 = vpack.c.b16 %v823, %v821
        %v858 = vpack.c.b16 %v824, %v822
        %v859 = vpack.c.b16 %v827, %v825
        %v860 = vpack.c.b16 %v828, %v826
        %893 = vmatprep.subr.bf16.mxu0 %v844
        %894 = vmatpush1.bf16.msra.mxu0 %v843
        %895 = vmatprep.subr.bf16.mxu0 %v842
        %896 = vmatpush1.bf16.msra.mxu0 %v841
        %897 = vmatprep.subr.bf16.mxu0 %v840
        %898 = vmatpush1.bf16.msra.mxu0 %v839
        %899 = vmatprep.subr.bf16.mxu0 %v838
        %900 = vmatpush1.bf16.msra.mxu0 %v837
        %901 = vmatprep.subr.bf16.mxu0 %v836
        %902 = vmatpush1.bf16.msra.mxu0 %v835
        %903 = vmatprep.subr.bf16.mxu0 %v834
        %904 = vmatpush1.bf16.msra.mxu0 %v833
        %905 = vmatprep.subr.bf16.mxu0 %v832
        %906 = vmatpush1.bf16.msra.mxu0 %v831
        %907 = vmatprep.subr.bf16.mxu0 %v830
        %908 = vmatpush1.bf16.msra.mxu0 %v829
        %909 = vmatprep.subr.bf16.mxu0 %v860
        %910 = vmatpush2.bf16.msra.mxu0 %v859
        %911 = vmatprep.subr.bf16.mxu0 %v858
        %912 = vmatpush2.bf16.msra.mxu0 %v857
        %913 = vmatprep.subr.bf16.mxu0 %v856
        %914 = vmatpush2.bf16.msra.mxu0 %v855
        %915 = vmatprep.subr.bf16.mxu0 %v854
        %916 = vmatpush2.bf16.msra.mxu0 %v853
        %917 = vmatprep.subr.bf16.mxu0 %v852
        %918 = vmatpush2.bf16.msra.mxu0 %v851
        %919 = vmatprep.subr.bf16.mxu0 %v850
        %920 = vmatpush2.bf16.msra.mxu0 %v849
        %921 = vmatprep.subr.bf16.mxu0 %v848
        %922 = vmatpush2.bf16.msra.mxu0 %v847
        %923 = vmatprep.subr.bf16.mxu0 %v846
        %924 = vmatpush2.bf16.msra.mxu0 %v845
        %925 = vmatprep.mubr.bf16.mxu0 %v722
        %926 = vmatmul.mubr.bf16.gmra.mxu0 %v721
        %v927 = vpop.f32.mrf.mxu0
        %v928 = vadd.f32 %v728, %v927
        %v929 = vpop.f32.mrf.mxu0
        %v930 = vadd.f32 %v732, %v929
        %v931 = vpop.f32.mrf.mxu0
        %v932 = vadd.f32 %v728, %v931
        %v933 = vpop.f32.mrf.mxu0
        %v934 = vadd.f32 %v732, %v933
        %935 = vmatprep.mubr.bf16.mxu0 %v724
        %936 = vmatmul.mubr.bf16.gmra.mxu0 %v723
        %v937 = vpop.f32.mrf.mxu0
        %v938 = vadd.f32 %v728, %v937
        %v939 = vpop.f32.mrf.mxu0
        %v940 = vadd.f32 %v732, %v939
        %v941 = vpop.f32.mrf.mxu0
        %v942 = vadd.f32 %v728, %v941
        %v943 = vpop.f32.mrf.mxu0
        %v944 = vadd.f32 %v732, %v943
        %945 = vdwg.mxu0
        %946 = vadd.xlane.f32.xlu0 %v928
        %v947 = vpop.xlane.xlu0 %946
        %948 = vadd.xlane.f32.xlu0 %v932
        %v949 = vpop.xlane.xlu0 %948
        %950 = vadd.xlane.f32.xlu0 %v938
        %v951 = vpop.xlane.xlu0 %950
        %952 = vadd.xlane.f32.xlu0 %v942
        %v953 = vpop.xlane.xlu0 %952
        %v954 = vmul.f32 %v947, %v576
        %v955 = vmul.f32 %v949, %v576
        %v956 = vmul.f32 %v951, %v576
        %v957 = vmul.f32 %v953, %v576
        %v958 = vmul.f32 %v928, %v928
        %v959 = vmul.f32 %v932, %v932
        %v960 = vmul.f32 %v938, %v938
        %v961 = vmul.f32 %v942, %v942
        %962 = vadd.xlane.f32.xlu0 %v958
        %v963 = vpop.xlane.xlu0 %962
        %964 = vadd.xlane.f32.xlu0 %v959
        %v965 = vpop.xlane.xlu0 %964
        %966 = vadd.xlane.f32.xlu0 %v960
        %v967 = vpop.xlane.xlu0 %966
        %968 = vadd.xlane.f32.xlu0 %v961
        %v969 = vpop.xlane.xlu0 %968
        %v970 = vmul.f32 %v963, %v576
        %v971 = vmul.f32 %v965, %v576
        %v972 = vmul.f32 %v967, %v576
        %v973 = vmul.f32 %v969, %v576
        %v974 = vmul.f32 %v954, %v954
        %v975 = vmul.f32 %v955, %v955
        %v976 = vmul.f32 %v956, %v956
        %v977 = vmul.f32 %v957, %v957
        %v978 = vsub.f32 %v970, %v974
        %v979 = vsub.f32 %v971, %v975
        %v980 = vsub.f32 %v972, %v976
        %v981 = vsub.f32 %v973, %v977
        %v982 = vmax.f32 %v978, 0.0
        %v983 = vmax.f32 %v979, 0.0
        %v984 = vmax.f32 %v980, 0.0
        %v985 = vmax.f32 %v981, 0.0
        %v986 = vadd.f32 %v982, 1e-05
        %v987 = vadd.f32 %v983, 1e-05
        %v988 = vadd.f32 %v984, 1e-05
        %v989 = vadd.f32 %v985, 1e-05
        %v990 = vrsqrt.pop %v986
        %v991 = vrsqrt.pop %v987
        %v992 = vrsqrt.pop %v988
        %v993 = vrsqrt.pop %v989
        %v994 = vsub.f32 %v928, %v954
        %v995 = vsub.f32 %v932, %v955
        %v996 = vsub.f32 %v938, %v956
        %v997 = vsub.f32 %v942, %v957
        %v998 = vmul.f32 %v994, %v990
        %v999 = vmul.f32 %v995, %v991
        %v1000 = vmul.f32 %v996, %v992
        %v1001 = vmul.f32 %v997, %v993
        %v1002 = vlaneseq
        %v1003 = vshrl.u32 %v1002, 7
        %v1004 = vsub.s32 4, %v1003
        %v1005 = vrot.slane %v421, %v1004
        %v1006 = vmul.f32 %v998, %v1005
        %v1007 = vmul.f32 %v999, %v1005
        %v1008 = vmul.f32 %v1000, %v1005
        %v1009 = vmul.f32 %v1001, %v1005
        %v1010 = vlaneseq
        %v1011 = vshrl.u32 %v1010, 7
        %v1012 = vsub.s32 5, %v1011
        %v1013 = vrot.slane %v421, %v1012
        %v1014 = vadd.f32 %v1006, %v1013
        %v1015 = vadd.f32 %v1007, %v1013
        %v1016 = vadd.f32 %v1008, %v1013
        %v1017 = vadd.f32 %v1009, %v1013
        %v1018 = vmax.f32 %v1014, 0.0
        %v1019 = vmax.f32 %v1015, 0.0
        %v1020 = vmax.f32 %v1016, 0.0
        %v1021 = vmax.f32 %v1017, 0.0
        %1022 = vadd.xlane.f32.xlu0 %v930
        %v1023 = vpop.xlane.xlu0 %1022
        %1024 = vadd.xlane.f32.xlu0 %v934
        %v1025 = vpop.xlane.xlu0 %1024
        %1026 = vadd.xlane.f32.xlu0 %v940
        %v1027 = vpop.xlane.xlu0 %1026
        %1028 = vadd.xlane.f32.xlu0 %v944
        %v1029 = vpop.xlane.xlu0 %1028
        %v1030 = vmul.f32 %v1023, %v576
        %v1031 = vmul.f32 %v1025, %v576
        %v1032 = vmul.f32 %v1027, %v576
        %v1033 = vmul.f32 %v1029, %v576
        %v1034 = vmul.f32 %v930, %v930
        %v1035 = vmul.f32 %v934, %v934
        %v1036 = vmul.f32 %v940, %v940
        %v1037 = vmul.f32 %v944, %v944
        %1038 = vadd.xlane.f32.xlu0 %v1034
        %v1039 = vpop.xlane.xlu0 %1038
        %1040 = vadd.xlane.f32.xlu0 %v1035
        %v1041 = vpop.xlane.xlu0 %1040
        %1042 = vadd.xlane.f32.xlu0 %v1036
        %v1043 = vpop.xlane.xlu0 %1042
        %1044 = vadd.xlane.f32.xlu0 %v1037
        %v1045 = vpop.xlane.xlu0 %1044
        %v1046 = vmul.f32 %v1039, %v576
        %v1047 = vmul.f32 %v1041, %v576
        %v1048 = vmul.f32 %v1043, %v576
        %v1049 = vmul.f32 %v1045, %v576
        %v1050 = vmul.f32 %v1030, %v1030
        %v1051 = vmul.f32 %v1031, %v1031
        %v1052 = vmul.f32 %v1032, %v1032
        %v1053 = vmul.f32 %v1033, %v1033
        %v1054 = vsub.f32 %v1046, %v1050
        %v1055 = vsub.f32 %v1047, %v1051
        %v1056 = vsub.f32 %v1048, %v1052
        %v1057 = vsub.f32 %v1049, %v1053
        %v1058 = vmax.f32 %v1054, 0.0
        %v1059 = vmax.f32 %v1055, 0.0
        %v1060 = vmax.f32 %v1056, 0.0
        %v1061 = vmax.f32 %v1057, 0.0
        %v1062 = vadd.f32 %v1058, 1e-05
        %v1063 = vadd.f32 %v1059, 1e-05
        %v1064 = vadd.f32 %v1060, 1e-05
        %v1065 = vadd.f32 %v1061, 1e-05
        %v1066 = vrsqrt.pop %v1062
        %v1067 = vrsqrt.pop %v1063
        %v1068 = vrsqrt.pop %v1064
        %v1069 = vrsqrt.pop %v1065
        %v1070 = vsub.f32 %v930, %v1030
        %v1071 = vsub.f32 %v934, %v1031
        %v1072 = vsub.f32 %v940, %v1032
        %v1073 = vsub.f32 %v944, %v1033
        %v1074 = vmul.f32 %v1070, %v1066
        %v1075 = vmul.f32 %v1071, %v1067
        %v1076 = vmul.f32 %v1072, %v1068
        %v1077 = vmul.f32 %v1073, %v1069
        %v1078 = vlaneseq
        %v1079 = vshrl.u32 %v1078, 7
        %v1080 = vsub.s32 4, %v1079
        %v1081 = vrot.slane %v422, %v1080
        %v1082 = vmul.f32 %v1074, %v1081
        %v1083 = vmul.f32 %v1075, %v1081
        %v1084 = vmul.f32 %v1076, %v1081
        %v1085 = vmul.f32 %v1077, %v1081
        %v1086 = vlaneseq
        %v1087 = vshrl.u32 %v1086, 7
        %v1088 = vsub.s32 5, %v1087
        %v1089 = vrot.slane %v422, %v1088
        %v1090 = vadd.f32 %v1082, %v1089
        %v1091 = vadd.f32 %v1083, %v1089
        %v1092 = vadd.f32 %v1084, %v1089
        %v1093 = vadd.f32 %v1085, %v1089
        %v1094 = vmax.f32 %v1090, 0.0
        %v1095 = vmax.f32 %v1091, 0.0
        %v1096 = vmax.f32 %v1092, 0.0
        %v1097 = vmax.f32 %v1093, 0.0
        %v1098 = vpack.c.bf16 %v1019, %v1018
        %v1099 = vpack.c.bf16 %v1095, %v1094
        %v1100 = vpack.c.bf16 %v1021, %v1020
        %v1101 = vpack.c.bf16 %v1097, %v1096
        %v1102 = vlaneseq
        %v1103 = vshrl.u32 %v1102, 7
        %v1104 = vsub.s32 6, %v1103
        %v1105 = vrot.slane %v421, %v1104
        %v1106 = vlaneseq
        %v1107 = vshrl.u32 %v1106, 7
        %v1108 = vsub.s32 6, %v1107
        %v1109 = vrot.slane %v422, %v1108
        %v1142 = vunpack.c.l.b16 %v357
        %v1143 = vunpack.c.h.b16 %v357
        %v1144 = vunpack.c.l.b16 %v358
        %v1145 = vunpack.c.h.b16 %v358
        %v1146 = vunpack.c.l.b16 %v359
        %v1147 = vunpack.c.h.b16 %v359
        %v1148 = vunpack.c.l.b16 %v360
        %v1149 = vunpack.c.h.b16 %v360
        %v1150 = vunpack.c.l.b16 %v361
        %v1151 = vunpack.c.h.b16 %v361
        %v1152 = vunpack.c.l.b16 %v362
        %v1153 = vunpack.c.h.b16 %v362
        %v1154 = vunpack.c.l.b16 %v363
        %v1155 = vunpack.c.h.b16 %v363
        %v1156 = vunpack.c.l.b16 %v364
        %v1157 = vunpack.c.h.b16 %v364
        %v1158 = vunpack.c.l.b16 %v365
        %v1159 = vunpack.c.h.b16 %v365
        %v1160 = vunpack.c.l.b16 %v366
        %v1161 = vunpack.c.h.b16 %v366
        %v1162 = vunpack.c.l.b16 %v367
        %v1163 = vunpack.c.h.b16 %v367
        %v1164 = vunpack.c.l.b16 %v368
        %v1165 = vunpack.c.h.b16 %v368
        %v1166 = vunpack.c.l.b16 %v369
        %v1167 = vunpack.c.h.b16 %v369
        %v1168 = vunpack.c.l.b16 %v370
        %v1169 = vunpack.c.h.b16 %v370
        %v1170 = vunpack.c.l.b16 %v371
        %v1171 = vunpack.c.h.b16 %v371
        %v1172 = vunpack.c.l.b16 %v372
        %v1173 = vunpack.c.h.b16 %v372
        %v1174 = vunpack.c.l.b16 %v373
        %v1175 = vunpack.c.h.b16 %v373
        %v1176 = vunpack.c.l.b16 %v374
        %v1177 = vunpack.c.h.b16 %v374
        %v1178 = vunpack.c.l.b16 %v375
        %v1179 = vunpack.c.h.b16 %v375
        %v1180 = vunpack.c.l.b16 %v376
        %v1181 = vunpack.c.h.b16 %v376
        %v1182 = vunpack.c.l.b16 %v377
        %v1183 = vunpack.c.h.b16 %v377
        %v1184 = vunpack.c.l.b16 %v378
        %v1185 = vunpack.c.h.b16 %v378
        %v1186 = vunpack.c.l.b16 %v379
        %v1187 = vunpack.c.h.b16 %v379
        %v1188 = vunpack.c.l.b16 %v380
        %v1189 = vunpack.c.h.b16 %v380
        %v1190 = vunpack.c.l.b16 %v381
        %v1191 = vunpack.c.h.b16 %v381
        %v1192 = vunpack.c.l.b16 %v382
        %v1193 = vunpack.c.h.b16 %v382
        %v1194 = vunpack.c.l.b16 %v383
        %v1195 = vunpack.c.h.b16 %v383
        %v1196 = vunpack.c.l.b16 %v384
        %v1197 = vunpack.c.h.b16 %v384
        %v1198 = vunpack.c.l.b16 %v385
        %v1199 = vunpack.c.h.b16 %v385
        %v1200 = vunpack.c.l.b16 %v386
        %v1201 = vunpack.c.h.b16 %v386
        %v1202 = vunpack.c.l.b16 %v387
        %v1203 = vunpack.c.h.b16 %v387
        %v1204 = vunpack.c.l.b16 %v388
        %v1205 = vunpack.c.h.b16 %v388
        %v1206 = vpack.c.b16 %v1144, %v1142
        %v1207 = vpack.c.b16 %v1145, %v1143
        %v1208 = vpack.c.b16 %v1148, %v1146
        %v1209 = vpack.c.b16 %v1149, %v1147
        %v1210 = vpack.c.b16 %v1152, %v1150
        %v1211 = vpack.c.b16 %v1153, %v1151
        %v1212 = vpack.c.b16 %v1156, %v1154
        %v1213 = vpack.c.b16 %v1157, %v1155
        %v1214 = vpack.c.b16 %v1160, %v1158
        %v1215 = vpack.c.b16 %v1161, %v1159
        %v1216 = vpack.c.b16 %v1164, %v1162
        %v1217 = vpack.c.b16 %v1165, %v1163
        %v1218 = vpack.c.b16 %v1168, %v1166
        %v1219 = vpack.c.b16 %v1169, %v1167
        %v1220 = vpack.c.b16 %v1172, %v1170
        %v1221 = vpack.c.b16 %v1173, %v1171
        %v1222 = vpack.c.b16 %v1176, %v1174
        %v1223 = vpack.c.b16 %v1177, %v1175
        %v1224 = vpack.c.b16 %v1180, %v1178
        %v1225 = vpack.c.b16 %v1181, %v1179
        %v1226 = vpack.c.b16 %v1184, %v1182
        %v1227 = vpack.c.b16 %v1185, %v1183
        %v1228 = vpack.c.b16 %v1188, %v1186
        %v1229 = vpack.c.b16 %v1189, %v1187
        %v1230 = vpack.c.b16 %v1192, %v1190
        %v1231 = vpack.c.b16 %v1193, %v1191
        %v1232 = vpack.c.b16 %v1196, %v1194
        %v1233 = vpack.c.b16 %v1197, %v1195
        %v1234 = vpack.c.b16 %v1200, %v1198
        %v1235 = vpack.c.b16 %v1201, %v1199
        %v1236 = vpack.c.b16 %v1204, %v1202
        %v1237 = vpack.c.b16 %v1205, %v1203
        %1270 = vmatprep.subr.bf16.mxu0 %v1221
        %1271 = vmatpush1.bf16.msra.mxu0 %v1220
        %1272 = vmatprep.subr.bf16.mxu0 %v1219
        %1273 = vmatpush1.bf16.msra.mxu0 %v1218
        %1274 = vmatprep.subr.bf16.mxu0 %v1217
        %1275 = vmatpush1.bf16.msra.mxu0 %v1216
        %1276 = vmatprep.subr.bf16.mxu0 %v1215
        %1277 = vmatpush1.bf16.msra.mxu0 %v1214
        %1278 = vmatprep.subr.bf16.mxu0 %v1213
        %1279 = vmatpush1.bf16.msra.mxu0 %v1212
        %1280 = vmatprep.subr.bf16.mxu0 %v1211
        %1281 = vmatpush1.bf16.msra.mxu0 %v1210
        %1282 = vmatprep.subr.bf16.mxu0 %v1209
        %1283 = vmatpush1.bf16.msra.mxu0 %v1208
        %1284 = vmatprep.subr.bf16.mxu0 %v1207
        %1285 = vmatpush1.bf16.msra.mxu0 %v1206
        %1286 = vmatprep.subr.bf16.mxu0 %v1237
        %1287 = vmatpush2.bf16.msra.mxu0 %v1236
        %1288 = vmatprep.subr.bf16.mxu0 %v1235
        %1289 = vmatpush2.bf16.msra.mxu0 %v1234
        %1290 = vmatprep.subr.bf16.mxu0 %v1233
        %1291 = vmatpush2.bf16.msra.mxu0 %v1232
        %1292 = vmatprep.subr.bf16.mxu0 %v1231
        %1293 = vmatpush2.bf16.msra.mxu0 %v1230
        %1294 = vmatprep.subr.bf16.mxu0 %v1229
        %1295 = vmatpush2.bf16.msra.mxu0 %v1228
        %1296 = vmatprep.subr.bf16.mxu0 %v1227
        %1297 = vmatpush2.bf16.msra.mxu0 %v1226
        %1298 = vmatprep.subr.bf16.mxu0 %v1225
        %1299 = vmatpush2.bf16.msra.mxu0 %v1224
        %1300 = vmatprep.subr.bf16.mxu0 %v1223
        %1301 = vmatpush2.bf16.msra.mxu0 %v1222
        %1302 = vmatprep.mubr.bf16.mxu0 %v1099
        %1303 = vmatmul.mubr.bf16.gmra.mxu0 %v1098
        %v1304 = vpop.f32.mrf.mxu0
        %v1305 = vadd.f32 %v1105, %v1304
        %v1306 = vpop.f32.mrf.mxu0
        %v1307 = vadd.f32 %v1109, %v1306
        %v1308 = vpop.f32.mrf.mxu0
        %v1309 = vadd.f32 %v1105, %v1308
        %v1310 = vpop.f32.mrf.mxu0
        %v1311 = vadd.f32 %v1109, %v1310
        %1312 = vmatprep.mubr.bf16.mxu0 %v1101
        %1313 = vmatmul.mubr.bf16.gmra.mxu0 %v1100
        %v1314 = vpop.f32.mrf.mxu0
        %v1315 = vadd.f32 %v1105, %v1314
        %v1316 = vpop.f32.mrf.mxu0
        %v1317 = vadd.f32 %v1109, %v1316
        %v1318 = vpop.f32.mrf.mxu0
        %v1319 = vadd.f32 %v1105, %v1318
        %v1320 = vpop.f32.mrf.mxu0
        %v1321 = vadd.f32 %v1109, %v1320
        %1322 = vdwg.mxu0
        %1323 = vadd.xlane.f32.xlu0 %v1305
        %v1324 = vpop.xlane.xlu0 %1323
        %1325 = vadd.xlane.f32.xlu0 %v1309
        %v1326 = vpop.xlane.xlu0 %1325
        %1327 = vadd.xlane.f32.xlu0 %v1315
        %v1328 = vpop.xlane.xlu0 %1327
        %1329 = vadd.xlane.f32.xlu0 %v1319
        %v1330 = vpop.xlane.xlu0 %1329
        %v1331 = vmul.f32 %v1324, %v576
        %v1332 = vmul.f32 %v1326, %v576
        %v1333 = vmul.f32 %v1328, %v576
        %v1334 = vmul.f32 %v1330, %v576
        %v1335 = vmul.f32 %v1305, %v1305
        %v1336 = vmul.f32 %v1309, %v1309
        %v1337 = vmul.f32 %v1315, %v1315
        %v1338 = vmul.f32 %v1319, %v1319
        %1339 = vadd.xlane.f32.xlu0 %v1335
        %v1340 = vpop.xlane.xlu0 %1339
        %1341 = vadd.xlane.f32.xlu0 %v1336
        %v1342 = vpop.xlane.xlu0 %1341
        %1343 = vadd.xlane.f32.xlu0 %v1337
        %v1344 = vpop.xlane.xlu0 %1343
        %1345 = vadd.xlane.f32.xlu0 %v1338
        %v1346 = vpop.xlane.xlu0 %1345
        %v1347 = vmul.f32 %v1340, %v576
        %v1348 = vmul.f32 %v1342, %v576
        %v1349 = vmul.f32 %v1344, %v576
        %v1350 = vmul.f32 %v1346, %v576
        %v1351 = vmul.f32 %v1331, %v1331
        %v1352 = vmul.f32 %v1332, %v1332
        %v1353 = vmul.f32 %v1333, %v1333
        %v1354 = vmul.f32 %v1334, %v1334
        %v1355 = vsub.f32 %v1347, %v1351
        %v1356 = vsub.f32 %v1348, %v1352
        %v1357 = vsub.f32 %v1349, %v1353
        %v1358 = vsub.f32 %v1350, %v1354
        %v1359 = vmax.f32 %v1355, 0.0
        %v1360 = vmax.f32 %v1356, 0.0
        %v1361 = vmax.f32 %v1357, 0.0
        %v1362 = vmax.f32 %v1358, 0.0
        %v1363 = vadd.f32 %v1359, 1e-05
        %v1364 = vadd.f32 %v1360, 1e-05
        %v1365 = vadd.f32 %v1361, 1e-05
        %v1366 = vadd.f32 %v1362, 1e-05
        %v1367 = vrsqrt.pop %v1363
        %v1368 = vrsqrt.pop %v1364
        %v1369 = vrsqrt.pop %v1365
        %v1370 = vrsqrt.pop %v1366
        %v1371 = vsub.f32 %v1305, %v1331
        %v1372 = vsub.f32 %v1309, %v1332
        %v1373 = vsub.f32 %v1315, %v1333
        %v1374 = vsub.f32 %v1319, %v1334
        %v1375 = vmul.f32 %v1371, %v1367
        %v1376 = vmul.f32 %v1372, %v1368
        %v1377 = vmul.f32 %v1373, %v1369
        %v1378 = vmul.f32 %v1374, %v1370
        %v1379 = vlaneseq
        %v1380 = vshrl.u32 %v1379, 7
        %v1381 = vsub.s32 7, %v1380
        %v1382 = vrot.slane %v421, %v1381
        %v1383 = vmul.f32 %v1375, %v1382
        %v1384 = vmul.f32 %v1376, %v1382
        %v1385 = vmul.f32 %v1377, %v1382
        %v1386 = vmul.f32 %v1378, %v1382
        %v1387 = vlaneseq
        %v1388 = vshrl.u32 %v1387, 7
        %v1389 = vsub.s32 0, %v1388
        %v1390 = vrot.slane %v423, %v1389
        %v1391 = vadd.f32 %v1383, %v1390
        %v1392 = vadd.f32 %v1384, %v1390
        %v1393 = vadd.f32 %v1385, %v1390
        %v1394 = vadd.f32 %v1386, %v1390
        %v1395 = vmax.f32 %v1391, 0.0
        %v1396 = vmax.f32 %v1392, 0.0
        %v1397 = vmax.f32 %v1393, 0.0
        %v1398 = vmax.f32 %v1394, 0.0
        %1399 = vadd.xlane.f32.xlu0 %v1307
        %v1400 = vpop.xlane.xlu0 %1399
        %1401 = vadd.xlane.f32.xlu0 %v1311
        %v1402 = vpop.xlane.xlu0 %1401
        %1403 = vadd.xlane.f32.xlu0 %v1317
        %v1404 = vpop.xlane.xlu0 %1403
        %1405 = vadd.xlane.f32.xlu0 %v1321
        %v1406 = vpop.xlane.xlu0 %1405
        %v1407 = vmul.f32 %v1400, %v576
        %v1408 = vmul.f32 %v1402, %v576
        %v1409 = vmul.f32 %v1404, %v576
        %v1410 = vmul.f32 %v1406, %v576
        %v1411 = vmul.f32 %v1307, %v1307
        %v1412 = vmul.f32 %v1311, %v1311
        %v1413 = vmul.f32 %v1317, %v1317
        %v1414 = vmul.f32 %v1321, %v1321
        %1415 = vadd.xlane.f32.xlu0 %v1411
        %v1416 = vpop.xlane.xlu0 %1415
        %1417 = vadd.xlane.f32.xlu0 %v1412
        %v1418 = vpop.xlane.xlu0 %1417
        %1419 = vadd.xlane.f32.xlu0 %v1413
        %v1420 = vpop.xlane.xlu0 %1419
        %1421 = vadd.xlane.f32.xlu0 %v1414
        %v1422 = vpop.xlane.xlu0 %1421
        %v1423 = vmul.f32 %v1416, %v576
        %v1424 = vmul.f32 %v1418, %v576
        %v1425 = vmul.f32 %v1420, %v576
        %v1426 = vmul.f32 %v1422, %v576
        %v1427 = vmul.f32 %v1407, %v1407
        %v1428 = vmul.f32 %v1408, %v1408
        %v1429 = vmul.f32 %v1409, %v1409
        %v1430 = vmul.f32 %v1410, %v1410
        %v1431 = vsub.f32 %v1423, %v1427
        %v1432 = vsub.f32 %v1424, %v1428
        %v1433 = vsub.f32 %v1425, %v1429
        %v1434 = vsub.f32 %v1426, %v1430
        %v1435 = vmax.f32 %v1431, 0.0
        %v1436 = vmax.f32 %v1432, 0.0
        %v1437 = vmax.f32 %v1433, 0.0
        %v1438 = vmax.f32 %v1434, 0.0
        %v1439 = vadd.f32 %v1435, 1e-05
        %v1440 = vadd.f32 %v1436, 1e-05
        %v1441 = vadd.f32 %v1437, 1e-05
        %v1442 = vadd.f32 %v1438, 1e-05
        %v1443 = vrsqrt.pop %v1439
        %v1444 = vrsqrt.pop %v1440
        %v1445 = vrsqrt.pop %v1441
        %v1446 = vrsqrt.pop %v1442
        %v1447 = vsub.f32 %v1307, %v1407
        %v1448 = vsub.f32 %v1311, %v1408
        %v1449 = vsub.f32 %v1317, %v1409
        %v1450 = vsub.f32 %v1321, %v1410
        %v1451 = vmul.f32 %v1447, %v1443
        %v1452 = vmul.f32 %v1448, %v1444
        %v1453 = vmul.f32 %v1449, %v1445
        %v1454 = vmul.f32 %v1450, %v1446
        %v1455 = vlaneseq
        %v1456 = vshrl.u32 %v1455, 7
        %v1457 = vsub.s32 7, %v1456
        %v1458 = vrot.slane %v422, %v1457
        %v1459 = vmul.f32 %v1451, %v1458
        %v1460 = vmul.f32 %v1452, %v1458
        %v1461 = vmul.f32 %v1453, %v1458
        %v1462 = vmul.f32 %v1454, %v1458
        %v1463 = vlaneseq
        %v1464 = vshrl.u32 %v1463, 7
        %v1465 = vsub.s32 0, %v1464
        %v1466 = vrot.slane %v424, %v1465
        %v1467 = vadd.f32 %v1459, %v1466
        %v1468 = vadd.f32 %v1460, %v1466
        %v1469 = vadd.f32 %v1461, %v1466
        %v1470 = vadd.f32 %v1462, %v1466
        %v1471 = vmax.f32 %v1467, 0.0
        %v1472 = vmax.f32 %v1468, 0.0
        %v1473 = vmax.f32 %v1469, 0.0
        %v1474 = vmax.f32 %v1470, 0.0
        %v1475 = vpack.c.bf16 %v1396, %v1395
        %v1476 = vpack.c.bf16 %v1472, %v1471
        %v1477 = vpack.c.bf16 %v1398, %v1397
        %v1478 = vpack.c.bf16 %v1474, %v1473
        %v1479 = vlaneseq
        %v1480 = vshrl.u32 %v1479, 7
        %v1481 = vsub.s32 1, %v1480
        %v1482 = vrot.slane %v423, %v1481
        %v1483 = vlaneseq
        %v1484 = vshrl.u32 %v1483, 7
        %v1485 = vsub.s32 1, %v1484
        %v1486 = vrot.slane %v424, %v1485
        %v1519 = vunpack.c.l.b16 %v389
        %v1520 = vunpack.c.h.b16 %v389
        %v1521 = vunpack.c.l.b16 %v390
        %v1522 = vunpack.c.h.b16 %v390
        %v1523 = vunpack.c.l.b16 %v391
        %v1524 = vunpack.c.h.b16 %v391
        %v1525 = vunpack.c.l.b16 %v392
        %v1526 = vunpack.c.h.b16 %v392
        %v1527 = vunpack.c.l.b16 %v393
        %v1528 = vunpack.c.h.b16 %v393
        %v1529 = vunpack.c.l.b16 %v394
        %v1530 = vunpack.c.h.b16 %v394
        %v1531 = vunpack.c.l.b16 %v395
        %v1532 = vunpack.c.h.b16 %v395
        %v1533 = vunpack.c.l.b16 %v396
        %v1534 = vunpack.c.h.b16 %v396
        %v1535 = vunpack.c.l.b16 %v397
        %v1536 = vunpack.c.h.b16 %v397
        %v1537 = vunpack.c.l.b16 %v398
        %v1538 = vunpack.c.h.b16 %v398
        %v1539 = vunpack.c.l.b16 %v399
        %v1540 = vunpack.c.h.b16 %v399
        %v1541 = vunpack.c.l.b16 %v400
        %v1542 = vunpack.c.h.b16 %v400
        %v1543 = vunpack.c.l.b16 %v401
        %v1544 = vunpack.c.h.b16 %v401
        %v1545 = vunpack.c.l.b16 %v402
        %v1546 = vunpack.c.h.b16 %v402
        %v1547 = vunpack.c.l.b16 %v403
        %v1548 = vunpack.c.h.b16 %v403
        %v1549 = vunpack.c.l.b16 %v404
        %v1550 = vunpack.c.h.b16 %v404
        %v1551 = vunpack.c.l.b16 %v405
        %v1552 = vunpack.c.h.b16 %v405
        %v1553 = vunpack.c.l.b16 %v406
        %v1554 = vunpack.c.h.b16 %v406
        %v1555 = vunpack.c.l.b16 %v407
        %v1556 = vunpack.c.h.b16 %v407
        %v1557 = vunpack.c.l.b16 %v408
        %v1558 = vunpack.c.h.b16 %v408
        %v1559 = vunpack.c.l.b16 %v409
        %v1560 = vunpack.c.h.b16 %v409
        %v1561 = vunpack.c.l.b16 %v410
        %v1562 = vunpack.c.h.b16 %v410
        %v1563 = vunpack.c.l.b16 %v411
        %v1564 = vunpack.c.h.b16 %v411
        %v1565 = vunpack.c.l.b16 %v412
        %v1566 = vunpack.c.h.b16 %v412
        %v1567 = vunpack.c.l.b16 %v413
        %v1568 = vunpack.c.h.b16 %v413
        %v1569 = vunpack.c.l.b16 %v414
        %v1570 = vunpack.c.h.b16 %v414
        %v1571 = vunpack.c.l.b16 %v415
        %v1572 = vunpack.c.h.b16 %v415
        %v1573 = vunpack.c.l.b16 %v416
        %v1574 = vunpack.c.h.b16 %v416
        %v1575 = vunpack.c.l.b16 %v417
        %v1576 = vunpack.c.h.b16 %v417
        %v1577 = vunpack.c.l.b16 %v418
        %v1578 = vunpack.c.h.b16 %v418
        %v1579 = vunpack.c.l.b16 %v419
        %v1580 = vunpack.c.h.b16 %v419
        %v1581 = vunpack.c.l.b16 %v420
        %v1582 = vunpack.c.h.b16 %v420
        %v1583 = vpack.c.b16 %v1521, %v1519
        %v1584 = vpack.c.b16 %v1522, %v1520
        %v1585 = vpack.c.b16 %v1525, %v1523
        %v1586 = vpack.c.b16 %v1526, %v1524
        %v1587 = vpack.c.b16 %v1529, %v1527
        %v1588 = vpack.c.b16 %v1530, %v1528
        %v1589 = vpack.c.b16 %v1533, %v1531
        %v1590 = vpack.c.b16 %v1534, %v1532
        %v1591 = vpack.c.b16 %v1537, %v1535
        %v1592 = vpack.c.b16 %v1538, %v1536
        %v1593 = vpack.c.b16 %v1541, %v1539
        %v1594 = vpack.c.b16 %v1542, %v1540
        %v1595 = vpack.c.b16 %v1545, %v1543
        %v1596 = vpack.c.b16 %v1546, %v1544
        %v1597 = vpack.c.b16 %v1549, %v1547
        %v1598 = vpack.c.b16 %v1550, %v1548
        %v1599 = vpack.c.b16 %v1553, %v1551
        %v1600 = vpack.c.b16 %v1554, %v1552
        %v1601 = vpack.c.b16 %v1557, %v1555
        %v1602 = vpack.c.b16 %v1558, %v1556
        %v1603 = vpack.c.b16 %v1561, %v1559
        %v1604 = vpack.c.b16 %v1562, %v1560
        %v1605 = vpack.c.b16 %v1565, %v1563
        %v1606 = vpack.c.b16 %v1566, %v1564
        %v1607 = vpack.c.b16 %v1569, %v1567
        %v1608 = vpack.c.b16 %v1570, %v1568
        %v1609 = vpack.c.b16 %v1573, %v1571
        %v1610 = vpack.c.b16 %v1574, %v1572
        %v1611 = vpack.c.b16 %v1577, %v1575
        %v1612 = vpack.c.b16 %v1578, %v1576
        %v1613 = vpack.c.b16 %v1581, %v1579
        %v1614 = vpack.c.b16 %v1582, %v1580
        %1647 = vmatprep.subr.bf16.mxu0 %v1598
        %1648 = vmatpush1.bf16.msra.mxu0 %v1597
        %1649 = vmatprep.subr.bf16.mxu0 %v1596
        %1650 = vmatpush1.bf16.msra.mxu0 %v1595
        %1651 = vmatprep.subr.bf16.mxu0 %v1594
        %1652 = vmatpush1.bf16.msra.mxu0 %v1593
        %1653 = vmatprep.subr.bf16.mxu0 %v1592
        %1654 = vmatpush1.bf16.msra.mxu0 %v1591
        %1655 = vmatprep.subr.bf16.mxu0 %v1590
        %1656 = vmatpush1.bf16.msra.mxu0 %v1589
        %1657 = vmatprep.subr.bf16.mxu0 %v1588
        %1658 = vmatpush1.bf16.msra.mxu0 %v1587
        %1659 = vmatprep.subr.bf16.mxu0 %v1586
        %1660 = vmatpush1.bf16.msra.mxu0 %v1585
        %1661 = vmatprep.subr.bf16.mxu0 %v1584
        %1662 = vmatpush1.bf16.msra.mxu0 %v1583
        %1663 = vmatprep.subr.bf16.mxu0 %v1614
        %1664 = vmatpush2.bf16.msra.mxu0 %v1613
        %1665 = vmatprep.subr.bf16.mxu0 %v1612
        %1666 = vmatpush2.bf16.msra.mxu0 %v1611
        %1667 = vmatprep.subr.bf16.mxu0 %v1610
        %1668 = vmatpush2.bf16.msra.mxu0 %v1609
        %1669 = vmatprep.subr.bf16.mxu0 %v1608
        %1670 = vmatpush2.bf16.msra.mxu0 %v1607
        %1671 = vmatprep.subr.bf16.mxu0 %v1606
        %1672 = vmatpush2.bf16.msra.mxu0 %v1605
        %1673 = vmatprep.subr.bf16.mxu0 %v1604
        %1674 = vmatpush2.bf16.msra.mxu0 %v1603
        %1675 = vmatprep.subr.bf16.mxu0 %v1602
        %1676 = vmatpush2.bf16.msra.mxu0 %v1601
        %1677 = vmatprep.subr.bf16.mxu0 %v1600
        %1678 = vmatpush2.bf16.msra.mxu0 %v1599
        %1679 = vmatprep.mubr.bf16.mxu0 %v1476
        %1680 = vmatmul.mubr.bf16.gmra.mxu0 %v1475
        %v1681 = vpop.f32.mrf.mxu0
        %v1682 = vadd.f32 %v1482, %v1681
        %v1683 = vpop.f32.mrf.mxu0
        %v1684 = vadd.f32 %v1486, %v1683
        %v1685 = vpop.f32.mrf.mxu0
        %v1686 = vadd.f32 %v1482, %v1685
        %v1687 = vpop.f32.mrf.mxu0
        %v1688 = vadd.f32 %v1486, %v1687
        %1689 = vmatprep.mubr.bf16.mxu0 %v1478
        %1690 = vmatmul.mubr.bf16.gmra.mxu0 %v1477
        %v1691 = vpop.f32.mrf.mxu0
        %v1692 = vadd.f32 %v1482, %v1691
        %v1693 = vpop.f32.mrf.mxu0
        %v1694 = vadd.f32 %v1486, %v1693
        %v1695 = vpop.f32.mrf.mxu0
        %v1696 = vadd.f32 %v1482, %v1695
        %v1697 = vpop.f32.mrf.mxu0
        %v1698 = vadd.f32 %v1486, %v1697
        %1699 = vdwg.mxu0
        %v1700 = vmax.f32 %v1684, -5.0
        %v1701 = vmax.f32 %v1688, -5.0
        %v1702 = vmax.f32 %v1694, -5.0
        %v1703 = vmax.f32 %v1698, -5.0
        %v1704 = vmin.f32 %v1700, 2.0
        %v1705 = vmin.f32 %v1701, 2.0
        %v1706 = vmin.f32 %v1702, 2.0
        %v1707 = vmin.f32 %v1703, 2.0
        %v1708 = vmul.f32 %v1704, 1.442695
        %v1709 = vpow.pop %v1708
        %v1710 = vmul.f32 %v1705, 1.442695
        %v1711 = vpow.pop %v1710
        %v1712 = vmul.f32 %v1706, 1.442695
        %v1713 = vpow.pop %v1712
        %v1714 = vmul.f32 %v1707, 1.442695
        %v1715 = vpow.pop %v1714
        %v1716 = vmul.f32 %v1709, %v304
        %v1717 = vmul.f32 %v1711, %v305
        %v1718 = vmul.f32 %v1713, %v306
        %v1719 = vmul.f32 %v1715, %v307
        %v1720 = vadd.f32 %v1682, %v1716
        %v1721 = vadd.f32 %v1686, %v1717
        %v1722 = vadd.f32 %v1692, %v1718
        %v1723 = vadd.f32 %v1696, %v1719
        %v1724 = vtanh.pop %v1720
        %v1725 = vtanh.pop %v1721
        %v1726 = vtanh.pop %v1722
        %v1727 = vtanh.pop %v1723
        %v1728 = vlaneseq
        %v1729 = vand.u32 %v1728, 127
        %vm1730 = vcmp.lt.s32.totalorder %v1729, 3
        %v1731 = vmul.f32 %v304, -0.5
        %v1732 = vmul.f32 %v305, -0.5
        %v1733 = vmul.f32 %v306, -0.5
        %v1734 = vmul.f32 %v307, -0.5
        %v1735 = vmul.f32 %v1731, %v304
        %v1736 = vmul.f32 %v1732, %v305
        %v1737 = vmul.f32 %v1733, %v306
        %v1738 = vmul.f32 %v1734, %v307
        %v1739 = vsub.f32 %v1735, %v1704
        %v1740 = vsub.f32 %v1736, %v1705
        %v1741 = vsub.f32 %v1737, %v1706
        %v1742 = vsub.f32 %v1738, %v1707
        %v1743 = vsub.f32 %v1739, 0.9189385
        %v1744 = vsub.f32 %v1740, 0.9189385
        %v1745 = vsub.f32 %v1741, 0.9189385
        %v1746 = vsub.f32 %v1742, 0.9189385
        %v1747 = vmul.f32 %v1724, %v1724
        %v1748 = vmul.f32 %v1725, %v1725
        %v1749 = vmul.f32 %v1726, %v1726
        %v1750 = vmul.f32 %v1727, %v1727
        %v1751 = vsub.f32 1.0, %v1747
        %v1752 = vsub.f32 1.0, %v1748
        %v1753 = vsub.f32 1.0, %v1749
        %v1754 = vsub.f32 1.0, %v1750
        %v1755 = vadd.f32 %v1751, 1e-06
        %v1756 = vadd.f32 %v1752, 1e-06
        %v1757 = vadd.f32 %v1753, 1e-06
        %v1758 = vadd.f32 %v1754, 1e-06
        %v1759 = vlog2.pop %v1755
        %v1760 = vmul.f32 %v1759, 0.6931472
        %v1761 = vlog2.pop %v1756
        %v1762 = vmul.f32 %v1761, 0.6931472
        %v1763 = vlog2.pop %v1757
        %v1764 = vmul.f32 %v1763, 0.6931472
        %v1765 = vlog2.pop %v1758
        %v1766 = vmul.f32 %v1765, 0.6931472
        %v1767 = vsub.f32 %v1743, %v1760
        %v1768 = vsub.f32 %v1744, %v1762
        %v1769 = vsub.f32 %v1745, %v1764
        %v1770 = vsub.f32 %v1746, %v1766
        %v1771 = vsel %vm1730, %v1767, 0.0
        %v1772 = vsel %vm1730, %v1768, 0.0
        %v1773 = vsel %vm1730, %v1769, 0.0
        %v1774 = vsel %vm1730, %v1770, 0.0
        %1775 = vadd.xlane.f32.xlu0 %v1771
        %v1776 = vpop.xlane.xlu0 %1775
        %1777 = vadd.xlane.f32.xlu0 %v1772
        %v1778 = vpop.xlane.xlu0 %1777
        %1779 = vadd.xlane.f32.xlu0 %v1773
        %v1780 = vpop.xlane.xlu0 %1779
        %1781 = vadd.xlane.f32.xlu0 %v1774
        %v1782 = vpop.xlane.xlu0 %1781
        %v1783 = vlaneseq
        %v1784 = vshrl.u32 %v1783, 7
        %v1785 = vsub.s32 3, %v1784
        %v1786 = vrot.slane %v423, %v1785
        %v1787 = vmul.f32 %v1786, %v1724
        %v1788 = vmul.f32 %v1786, %v1725
        %v1789 = vmul.f32 %v1786, %v1726
        %v1790 = vmul.f32 %v1786, %v1727
        %v1791 = vlaneseq
        %v1792 = vshrl.u32 %v1791, 7
        %v1793 = vsub.s32 2, %v1792
        %v1794 = vrot.slane %v423, %v1793
        %v1795 = vadd.f32 %v1794, %v1787
        %v1796 = vadd.f32 %v1794, %v1788
        %v1797 = vadd.f32 %v1794, %v1789
        %v1798 = vadd.f32 %v1794, %v1790
        %vm1799 = vcmp.eq.s32.totalorder %v1729, 4
        %v1800 = vsel %vm1799, %v1682, 0.0
        %v1801 = vsel %vm1799, %v1686, 0.0
        %v1802 = vsel %vm1799, %v1692, 0.0
        %v1803 = vsel %vm1799, %v1696, 0.0
        %v1804 = vsel %vm1730, %v1795, %v1800
        %v1805 = vsel %vm1730, %v1796, %v1801
        %v1806 = vsel %vm1730, %v1797, %v1802
        %v1807 = vsel %vm1730, %v1798, %v1803
        %vm1808 = vcmp.eq.s32.totalorder %v1729, 3
        %v1809 = vsel %vm1808, %v1776, %v1804
        %v1810 = vsel %vm1808, %v1778, %v1805
        %v1811 = vsel %vm1808, %v1780, %v1806
        %v1812 = vsel %vm1808, %v1782, %v1807
        %1813 = vst [vmem:[%s300] sm:$0xff] %v1809
        %1814 = vst [vmem:[%s300 + $0x8] sm:$0xff] %v1810
        %1815 = vst [vmem:[%s300 + $0x10] sm:$0xff] %v1811
        %1816 = vst [vmem:[%s300 + $0x18] sm:$0xff] %v1812
        %s1817 = sand.u32 %s142, 1
        %s1818 = scalar_lea.sflag [#allocation4], %s1817
        %s1819 = sand.u32 %s142, 1
        %s1820 = smul.addr %s1819, 32
        %s1821 = scalar_lea.vmem [#allocation11], %s1820
        // Predicated region
        $region61: #{tpu_custom_call.1} parent=39 // pred_check
          %p1822 = pneg %p152
        $region62: #{tpu_custom_call.1} parent=39 // pred_check_branch
          %1824 = sbr.rel (%p1822) target = $region64
        $region63: #{tpu_custom_call.1} parent=39 // pred_region
          %s1825 = smul.u32 4, %s24
          %s1827 = ssub.s32 512, 512
          %1828 = vsyncadd %s1818, %s1827
          %s1829 = smul.addr %s1825, 128
          %s1830 = scalar_lea.hbm %s5, %s1829
          %s1831 = sshll.u32 %s1821, 4
          %s1832 = int_to_ptr.vmem [resolvable:$true] %s1831
          %1837 = dma.vmem_to_hbm [thread:$0]  %s1832, 512, %s1830, %s1818, 128, 128, 8
        $region64: #{tpu_custom_call.1} parent=39 // pred_fallthru
          _
      $region40: #{tpu_custom_call.1} parent=5 // pred_fallthru
        _
      %p1838 = scmp.le.s32.totalorder 2, %s19
      // Predicated region
      $region65: #{tpu_custom_call.1} parent=5 // pred_check
        %p1839 = pneg %p1838
      $region66: #{tpu_custom_call.1} parent=5 // pred_check_branch
        %1841 = sbr.rel (%p1839) target = $region68
      $region67: #{tpu_custom_call.1} parent=5 // pred_region
        %s1842 = ssub.s32 %s19, 2
        // Predicated region
        $region69: #{tpu_custom_call.1} parent=67 // pred_check
          %p1843 = pneg %p158
        $region70: #{tpu_custom_call.1} parent=67 // pred_check_branch
          %1845 = sbr.rel (%p1843) target = $region72
        $region71: #{tpu_custom_call.1} parent=67 // pred_region
          %s1846 = sand.u32 %s143, 1
          %s1847 = scalar_lea.sflag [#allocation4], %s1846
          %s1848 = sand.u32 %s143, 1
          %s1849 = smul.addr %s1848, 32
          %s1850 = scalar_lea.vmem [#allocation11], %s1849
          %1851 = dma.done %s1847, 512
        $region72: #{tpu_custom_call.1} parent=67 // pred_fallthru
          _
      $region68: #{tpu_custom_call.1} parent=5 // pred_fallthru
        _
    $region6: #{tpu_custom_call.1} parent=1 // loop_footer
      %s23 = sadd.s32 1, %s19
    $region7: #{tpu_custom_call.1} parent=1 // loop_footer_branch
      %18 = sbr.rel target = $region3
    $region8: #{tpu_custom_call.1} parent=1 // loop_exit
      _
    %1852 = vsyncpa [#allocation3], 1
    %s1853 = scalar_lea.sflag [#allocation3], 1
    %1854 = vsyncpa %s1853, 1
    %1855 = vsyncpa [#allocation6], 1
    %1856 = vsyncpa [#allocation9], 1
    %1857 = vsyncpa [#allocation4], 1
    %s1858 = scalar_lea.sflag [#allocation4], 1
    %1859 = vsyncpa %s1858, 1

</llo_original>
